<compile_context>
chip_gen: v7x
topology: tpu7x:2x2x1
jax: 0.10.0
libtpu: 0.0.40
codegen_flags: <defaults>
</compile_context>

<pallas_src>
import jax
import jax.numpy as jnp
from jax.experimental import pallas as pl
from jax.experimental.pallas import tpu as pltpu


def _conv_bn_relu_kernel(xr_ref, xi_ref, wrr_ref, wri_ref, wir_ref, wii_ref,
                         sr_ref, si_ref, or_ref, oi_ref):
    """Fused 1x1x1 conv (real/imag-split channels) + folded-BN shift + ReLU.

    xr_ref/xi_ref: (C_in,  tile_m)  real / imag spectral activations
    w??_ref:       (C_out, C_in)    conv-weight quadrants, BN scale pre-folded
    sr/si_ref:     (C_out, 1)       folded BN shift = beta - mean*scale
    or/oi_ref:     (C_out, tile_m)  real / imag outputs (lane-dense stores)
    """
    xr = xr_ref[...]
    xi = xi_ref[...]
    acc_r = (jnp.dot(wrr_ref[...], xr, preferred_element_type=jnp.float32)
             + jnp.dot(wri_ref[...], xi, preferred_element_type=jnp.float32))
    acc_i = (jnp.dot(wir_ref[...], xr, preferred_element_type=jnp.float32)
             + jnp.dot(wii_ref[...], xi, preferred_element_type=jnp.float32))
    or_ref[...] = jnp.maximum(acc_r + sr_ref[...], 0.0).astype(or_ref.dtype)
    oi_ref[...] = jnp.maximum(acc_i + si_ref[...], 0.0).astype(oi_ref.dtype)


def _choose_tile_m(M, c_in, c_out, batch, itemsize):
    """Pick the spectral (lane-axis) tile size.

    Targets >= ~2 MiB of HBM traffic per grid step (per-step pipeline overhead
    is ~0.35 us, so tiny tiles are overhead-bound), caps the double-buffered
    activation working set at 32 MiB (safe on v7x's 64 MiB VMEM, comfortable
    on v5e/v6e's 128 MiB), and keeps >= 2 parallel grid steps so both v7x
    TensorCores get work.  Tiles are either the full dim or a multiple of 128.
    """
    bytes_per_col = 2 * (c_in + c_out) * itemsize        # in(r+i) + out(r+i)
    target_cols = pl.cdiv(2 * 1024 * 1024, bytes_per_col)
    vmem_cols = (32 * 1024 * 1024) // (2 * bytes_per_col)  # double-buffered
    tile_m = min(max(target_cols, 512), vmem_cols, M)
    if tile_m >= M:
        tile_m = M                                        # full dim: always legal
    else:
        tile_m = max(128, (tile_m // 128) * 128)          # lane-dense tiles
    # v7x megacore: avoid collapsing the whole parallel grid to a single step.
    if batch * pl.cdiv(M, tile_m) < 2 and M > 256:
        tile_m = ((pl.cdiv(M, 2) + 127) // 128) * 128
    return tile_m


def _conv_bn_relu_pallas(xr, xi, wrr, wri, wir, wii, shift_r, shift_i):
    """(B, C_in, M) real/imag -> (B, C_out, M) real/imag, fused conv+BN+ReLU."""
    B, C_in, M = xr.shape
    C_out = wrr.shape[0]
    itemsize = jnp.dtype(xr.dtype).itemsize

    tile_m = _choose_tile_m(M, C_in, C_out, B, itemsize)
    num_m = pl.cdiv(M, tile_m)   # ragged last block: OOB output columns dropped

    # VMEM budget from the actual working set (double-buffered activations +
    # weights + headroom), clamped to stay legal on v7x (64 MiB physical)
    # while not throttling v5e/v6e.
    act_bytes = 2 * 2 * (C_in + C_out) * itemsize * tile_m
    w_bytes = (4 * C_out * C_in + 2 * C_out) * 4
    vmem_limit = int(min(max(act_bytes + 4 * w_bytes + (8 << 20), 32 << 20),
                         48 << 20))

    x_spec = pl.BlockSpec((None, C_in, tile_m), lambda b, i: (b, 0, i))
    w_spec = pl.BlockSpec((C_out, C_in), lambda b, i: (0, 0))
    s_spec = pl.BlockSpec((C_out, 1), lambda b, i: (0, 0))
    o_spec = pl.BlockSpec((None, C_out, tile_m), lambda b, i: (b, 0, i))

    return pl.pallas_call(
        _conv_bn_relu_kernel,
        out_shape=(jax.ShapeDtypeStruct((B, C_out, M), jnp.float32),
                   jax.ShapeDtypeStruct((B, C_out, M), jnp.float32)),
        grid_spec=pltpu.PrefetchScalarGridSpec(
            num_scalar_prefetch=0,
            grid=(B, num_m),
            in_specs=[x_spec, x_spec,                      # xr, xi
                      w_spec, w_spec, w_spec, w_spec,      # Wrr, Wri, Wir, Wii
                      s_spec, s_spec],                     # shift_r, shift_i
            out_specs=[o_spec, o_spec],
        ),
        compiler_params=pltpu.CompilerParams(
            dimension_semantics=("parallel", "parallel"),
            vmem_limit_bytes=vmem_limit,
        ),
    )(xr, xi, wrr, wri, wir, wii, shift_r, shift_i)


def fourier_unit_forward(x, conv_weight, bn_gamma, bn_beta, bn_mean, bn_var,
                         eps=1e-5, use_bf16=False):
    """FourierUnit.forward.

    x:           (B, C_in, D, H, W) float32, NCDHW like PyTorch.
    conv_weight: (2*C_out, 2*C_in, 1, 1, 1) -- Conv3d kernel_size=1, bias=False.
    bn_*:        (2*C_out,) BatchNorm3d parameters / running stats.
    """
    B, C, D, H, W = x.shape

    # TODO(synk): rfftn/irfftn have no Pallas equivalent; computed with jnp.fft.
    ffted = jnp.fft.rfftn(x, axes=(-3, -2, -1), norm="ortho")    # (B,C,D,H,Wf)
    Wf = ffted.shape[-1]
    M = D * H * Wf

    # No stack/permute HBM pass: real & imag go to the kernel as two separate
    # (B, C, M) slabs (pure reshapes); torch's (2c / 2c+1) channel interleave
    # is applied to the weight matrix instead (cheap host-side reshuffle).
    xr = jnp.real(ffted).reshape(B, C, M)
    xi = jnp.imag(ffted).reshape(B, C, M)

    C2out = conv_weight.shape[0]
    C_out = C2out // 2
    w_mat = conv_weight.reshape(C2out, 2 * C)                    # (2C_out, 2C_in)

    # BatchNorm3d folded to affine (inference form with provided stats):
    # scale folds into the weights, shift + ReLU stay in the kernel epilogue.
    # TODO(synk): PyTorch train-mode BN (per-batch statistics) not reproduced.
    inv_std = 1.0 / jnp.sqrt(bn_var + eps)
    scale = bn_gamma * inv_std                                   # (2C_out,)
    w_eff = w_mat * scale[:, None]
    shift = (bn_beta - bn_mean * scale).reshape(C2out, 1)

    # Quadrant split matching torch's channel layout:
    #   input col 2c = real(c), col 2c+1 = imag(c)
    #   output row 2o = real(o), row 2o+1 = imag(o)
    wrr = w_eff[0::2, 0::2]
    wri = w_eff[0::2, 1::2]
    wir = w_eff[1::2, 0::2]
    wii = w_eff[1::2, 1::2]
    shift_r = shift[0::2]
    shift_i = shift[1::2]

    if use_bf16:
        # Optional: halves input-side HBM traffic on this memory-bound kernel;
        # accumulation stays f32 (preferred_element_type) and epilogue is f32.
        xr, xi = xr.astype(jnp.bfloat16), xi.astype(jnp.bfloat16)
        wrr, wri = wrr.astype(jnp.bfloat16), wri.astype(jnp.bfloat16)
        wir, wii = wir.astype(jnp.bfloat16), wii.astype(jnp.bfloat16)

    out_r, out_i = _conv_bn_relu_pallas(xr, xi, wrr, wri, wir, wii,
                                        shift_r, shift_i)        # (B,C_out,M) x2

    real = out_r.reshape(B, C_out, D, H, Wf)                     # pure reshapes
    imag = out_i.reshape(B, C_out, D, H, Wf)
    complex_output = jax.lax.complex(real, imag)                 # complex64

    # s=(D,H,W): identical to PyTorch (no `s`) for even W, and round-trips the
    # original width for odd W.
    output = jnp.fft.irfftn(complex_output, s=(D, H, W),
                            axes=(-3, -2, -1), norm="ortho")
    return output


def _fourier_unit_reference(x, conv_weight, bn_gamma, bn_beta, bn_mean, bn_var,
                            eps=1e-5):
    """Pure-JAX replica of the PyTorch forward (for a correctness check)."""
    B, C, D, H, W = x.shape
    ffted = jnp.fft.rfftn(x, axes=(-3, -2, -1), norm="ortho")
    Wf = ffted.shape[-1]
    st = jnp.stack((jnp.real(ffted), jnp.imag(ffted)), axis=2)   # (B,C,2,D,H,Wf)
    y = st.reshape(B, 2 * C, D, H, Wf)
    w = conv_weight.reshape(conv_weight.shape[0], 2 * C)
    z = jnp.einsum("ok,bkdhw->bodhw", w, y,
                   precision=jax.lax.Precision.HIGHEST)
    sc = (bn_gamma / jnp.sqrt(bn_var + eps))[None, :, None, None, None]
    z = (z - bn_mean[None, :, None, None, None]) * sc \
        + bn_beta[None, :, None, None, None]
    z = jnp.maximum(z, 0.0)
    C_out = conv_weight.shape[0] // 2
    z = z.reshape(B, C_out, 2, D, H, Wf)
    cplx = jax.lax.complex(z[:, :, 0], z[:, :, 1])
    return jnp.fft.irfftn(cplx, s=(D, H, W), axes=(-3, -2, -1), norm="ortho")


if __name__ == "__main__":
    key = jax.random.PRNGKey(0)
    B, C_in, C_out, D, H, W = 2, 4, 4, 8, 16, 16

    k_x, k_w, k_g, k_b, k_m, k_v = jax.random.split(key, 6)
    x = jax.random.normal(k_x, (B, C_in, D, H, W), dtype=jnp.float32)

    # Deterministic synthetic parameters (shapes from FourierUnit.__init__).
    fan_in = 2 * C_in
    conv_weight = (jax.random.normal(k_w, (2 * C_out, 2 * C_in, 1, 1, 1),
                                     dtype=jnp.float32)
                   / jnp.sqrt(jnp.float32(fan_in)))
    bn_gamma = 1.0 + 0.1 * jax.random.normal(k_g, (2 * C_out,), jnp.float32)
    bn_beta = 0.1 * jax.random.normal(k_b, (2 * C_out,), jnp.float32)
    bn_mean = 0.1 * jax.random.normal(k_m, (2 * C_out,), jnp.float32)
    bn_var = 1.0 + 0.1 * jax.random.uniform(k_v, (2 * C_out,), jnp.float32)

    out = fourier_unit_forward(x, conv_weight, bn_gamma, bn_beta,
                               bn_mean, bn_var)
    out = jax.block_until_ready(out)
    assert out.shape == (B, C_out, D, H, W), out.shape
    assert out.dtype == jnp.float32

    ref = jax.block_until_ready(
        _fourier_unit_reference(x, conv_weight, bn_gamma, bn_beta,
                                bn_mean, bn_var))
    max_err = float(jnp.max(jnp.abs(out - ref)))
    assert max_err < 1e-3, f"max abs error vs reference: {max_err}"

    print("KERNEL_OK")
</pallas_src>

<mosaic_0001>
module attributes {stable_mosaic.version = 11 : i64} {
  func.func @_conv_bn_relu_kernel(%arg0: i32, %arg1: i32, %arg2: memref<1x4x1152xf32, #tpu.memory_space<vmem>>, %arg3: memref<1x4x1152xf32, #tpu.memory_space<vmem>>, %arg4: memref<4x4xf32, #tpu.memory_space<vmem>>, %arg5: memref<4x4xf32, #tpu.memory_space<vmem>>, %arg6: memref<4x4xf32, #tpu.memory_space<vmem>>, %arg7: memref<4x4xf32, #tpu.memory_space<vmem>>, %arg8: memref<4x1xf32, #tpu.memory_space<vmem>>, %arg9: memref<4x1xf32, #tpu.memory_space<vmem>>, %arg10: memref<1x4x1152xf32, #tpu.memory_space<vmem>>, %arg11: memref<1x4x1152xf32, #tpu.memory_space<vmem>>) attributes {dimension_semantics = [#tpu.dimension_semantics<parallel>, #tpu.dimension_semantics<parallel>], iteration_bounds = array<i64: 2, 1>, scalar_prefetch = 0 : i64, scratch_operands = 0 : i64, tpu.core_type = #tpu.core_type<tc>, window_params = [{transform_indices = @transform_0, window_bounds = array<i64: 1, 4, 1152>}, {transform_indices = @transform_1, window_bounds = array<i64: 1, 4, 1152>}, {pipeline_mode = #tpu.pipeline_mode<synchronous>, transform_indices = @transform_2, window_bounds = array<i64: 4, 4>}, {pipeline_mode = #tpu.pipeline_mode<synchronous>, transform_indices = @transform_3, window_bounds = array<i64: 4, 4>}, {pipeline_mode = #tpu.pipeline_mode<synchronous>, transform_indices = @transform_4, window_bounds = array<i64: 4, 4>}, {pipeline_mode = #tpu.pipeline_mode<synchronous>, transform_indices = @transform_5, window_bounds = array<i64: 4, 4>}, {pipeline_mode = #tpu.pipeline_mode<synchronous>, transform_indices = @transform_6, window_bounds = array<i64: 4, 1>}, {pipeline_mode = #tpu.pipeline_mode<synchronous>, transform_indices = @transform_7, window_bounds = array<i64: 4, 1>}, {transform_indices = @transform_8, window_bounds = array<i64: 1, 4, 1152>}, {transform_indices = @transform_9, window_bounds = array<i64: 1, 4, 1152>}]} {
    %c0 = arith.constant 0 : index
    %c0_0 = arith.constant 0 : index
    %c0_1 = arith.constant 0 : index
    %0 = vector.load %arg2[%c0, %c0_0, %c0_1] : memref<1x4x1152xf32, #tpu.memory_space<vmem>>, vector<1x4x1152xf32>
    %1 = vector.shape_cast %0 : vector<1x4x1152xf32> to vector<4x1152xf32>
    %c0_2 = arith.constant 0 : index
    %c0_3 = arith.constant 0 : index
    %c0_4 = arith.constant 0 : index
    %2 = vector.load %arg3[%c0_2, %c0_3, %c0_4] : memref<1x4x1152xf32, #tpu.memory_space<vmem>>, vector<1x4x1152xf32>
    %3 = vector.shape_cast %2 : vector<1x4x1152xf32> to vector<4x1152xf32>
    %c0_5 = arith.constant 0 : index
    %c0_6 = arith.constant 0 : index
    %4 = vector.load %arg4[%c0_5, %c0_6] : memref<4x4xf32, #tpu.memory_space<vmem>>, vector<4x4xf32>
    %cst = arith.constant dense<0.000000e+00> : vector<4x1152xf32>
    %5 = tpu.matmul %4, %1, %cst {dimension_numbers = #tpu.dot_dimension_numbers<[1], [0], [0], [1], [0, 0, 1, 1], [], []>} : vector<4x4xf32>, vector<4x1152xf32>, vector<4x1152xf32> -> vector<4x1152xf32>
    %c0_7 = arith.constant 0 : index
    %c0_8 = arith.constant 0 : index
    %6 = vector.load %arg5[%c0_7, %c0_8] : memref<4x4xf32, #tpu.memory_space<vmem>>, vector<4x4xf32>
    %cst_9 = arith.constant dense<0.000000e+00> : vector<4x1152xf32>
    %7 = tpu.matmul %6, %3, %cst_9 {dimension_numbers = #tpu.dot_dimension_numbers<[1], [0], [0], [1], [0, 0, 1, 1], [], []>} : vector<4x4xf32>, vector<4x1152xf32>, vector<4x1152xf32> -> vector<4x1152xf32>
    %8 = arith.addf %5, %7 : vector<4x1152xf32>
    %c0_10 = arith.constant 0 : index
    %c0_11 = arith.constant 0 : index
    %9 = vector.load %arg6[%c0_10, %c0_11] : memref<4x4xf32, #tpu.memory_space<vmem>>, vector<4x4xf32>
    %cst_12 = arith.constant dense<0.000000e+00> : vector<4x1152xf32>
    %10 = tpu.matmul %9, %1, %cst_12 {dimension_numbers = #tpu.dot_dimension_numbers<[1], [0], [0], [1], [0, 0, 1, 1], [], []>} : vector<4x4xf32>, vector<4x1152xf32>, vector<4x1152xf32> -> vector<4x1152xf32>
    %c0_13 = arith.constant 0 : index
    %c0_14 = arith.constant 0 : index
    %11 = vector.load %arg7[%c0_13, %c0_14] : memref<4x4xf32, #tpu.memory_space<vmem>>, vector<4x4xf32>
    %cst_15 = arith.constant dense<0.000000e+00> : vector<4x1152xf32>
    %12 = tpu.matmul %11, %3, %cst_15 {dimension_numbers = #tpu.dot_dimension_numbers<[1], [0], [0], [1], [0, 0, 1, 1], [], []>} : vector<4x4xf32>, vector<4x1152xf32>, vector<4x1152xf32> -> vector<4x1152xf32>
    %13 = arith.addf %10, %12 : vector<4x1152xf32>
    %c0_16 = arith.constant 0 : index
    %c0_17 = arith.constant 0 : index
    %14 = vector.load %arg8[%c0_16, %c0_17] : memref<4x1xf32, #tpu.memory_space<vmem>>, vector<4x1xf32>
    %15 = vector.broadcast %14 : vector<4x1xf32> to vector<4x1152xf32>
    %16 = arith.addf %8, %15 : vector<4x1152xf32>
    %cst_18 = arith.constant 0.000000e+00 : f32
    %17 = vector.broadcast %cst_18 : f32 to vector<4x1152xf32>
    %18 = arith.maximumf %16, %17 : vector<4x1152xf32>
    %c0_19 = arith.constant 0 : index
    %c0_20 = arith.constant 0 : index
    %c0_21 = arith.constant 0 : index
    %19 = vector.load %arg10[%c0_19, %c0_20, %c0_21] : memref<1x4x1152xf32, #tpu.memory_space<vmem>>, vector<1x4x1152xf32>
    %20 = vector.shape_cast %19 : vector<1x4x1152xf32> to vector<4x1152xf32>
    %21 = vector.shape_cast %18 : vector<4x1152xf32> to vector<1x4x1152xf32>
    tpu.vector_store %arg10[%c0_19, %c0_20, %c0_21], %21 {strides = array<i32>} : memref<1x4x1152xf32, #tpu.memory_space<vmem>>, vector<1x4x1152xf32>,
    %c0_22 = arith.constant 0 : index
    %c0_23 = arith.constant 0 : index
    %22 = vector.load %arg9[%c0_22, %c0_23] : memref<4x1xf32, #tpu.memory_space<vmem>>, vector<4x1xf32>
    %23 = vector.broadcast %22 : vector<4x1xf32> to vector<4x1152xf32>
    %24 = arith.addf %13, %23 : vector<4x1152xf32>
    %cst_24 = arith.constant 0.000000e+00 : f32
    %25 = vector.broadcast %cst_24 : f32 to vector<4x1152xf32>
    %26 = arith.maximumf %24, %25 : vector<4x1152xf32>
    %c0_25 = arith.constant 0 : index
    %c0_26 = arith.constant 0 : index
    %c0_27 = arith.constant 0 : index
    %27 = vector.load %arg11[%c0_25, %c0_26, %c0_27] : memref<1x4x1152xf32, #tpu.memory_space<vmem>>, vector<1x4x1152xf32>
    %28 = vector.shape_cast %27 : vector<1x4x1152xf32> to vector<4x1152xf32>
    %29 = vector.shape_cast %26 : vector<4x1152xf32> to vector<1x4x1152xf32>
    tpu.vector_store %arg11[%c0_25, %c0_26, %c0_27], %29 {strides = array<i32>} : memref<1x4x1152xf32, #tpu.memory_space<vmem>>, vector<1x4x1152xf32>,
    return
  }
  func.func @transform_0(%arg0: i32, %arg1: i32) -> (i32, i32, i32) {
    %c0_i32 = arith.constant 0 : i32
    %c0_i32_0 = arith.constant 0 : i32
    return %arg0, %c0_i32, %arg1 : i32, i32, i32
  }
  func.func @transform_1(%arg0: i32, %arg1: i32) -> (i32, i32, i32) {
    %c0_i32 = arith.constant 0 : i32
    %c0_i32_0 = arith.constant 0 : i32
    return %arg0, %c0_i32, %arg1 : i32, i32, i32
  }
  func.func @transform_2(%arg0: i32, %arg1: i32) -> (i32, i32) {
    %c0_i32 = arith.constant 0 : i32
    %c0_i32_0 = arith.constant 0 : i32
    %c0_i32_1 = arith.constant 0 : i32
    return %c0_i32, %c0_i32_0 : i32, i32
  }
  func.func @transform_3(%arg0: i32, %arg1: i32) -> (i32, i32) {
    %c0_i32 = arith.constant 0 : i32
    %c0_i32_0 = arith.constant 0 : i32
    %c0_i32_1 = arith.constant 0 : i32
    return %c0_i32, %c0_i32_0 : i32, i32
  }
  func.func @transform_4(%arg0: i32, %arg1: i32) -> (i32, i32) {
    %c0_i32 = arith.constant 0 : i32
    %c0_i32_0 = arith.constant 0 : i32
    %c0_i32_1 = arith.constant 0 : i32
    return %c0_i32, %c0_i32_0 : i32, i32
  }
  func.func @transform_5(%arg0: i32, %arg1: i32) -> (i32, i32) {
    %c0_i32 = arith.constant 0 : i32
    %c0_i32_0 = arith.constant 0 : i32
    %c0_i32_1 = arith.constant 0 : i32
    return %c0_i32, %c0_i32_0 : i32, i32
  }
  func.func @transform_6(%arg0: i32, %arg1: i32) -> (i32, i32) {
    %c0_i32 = arith.constant 0 : i32
    %c0_i32_0 = arith.constant 0 : i32
    %c0_i32_1 = arith.constant 0 : i32
    return %c0_i32, %c0_i32_0 : i32, i32
  }
  func.func @transform_7(%arg0: i32, %arg1: i32) -> (i32, i32) {
    %c0_i32 = arith.constant 0 : i32
    %c0_i32_0 = arith.constant 0 : i32
    %c0_i32_1 = arith.constant 0 : i32
    return %c0_i32, %c0_i32_0 : i32, i32
  }
  func.func @transform_8(%arg0: i32, %arg1: i32) -> (i32, i32, i32) {
    %c0_i32 = arith.constant 0 : i32
    %c0_i32_0 = arith.constant 0 : i32
    return %arg0, %c0_i32, %arg1 : i32, i32, i32
  }
  func.func @transform_9(%arg0: i32, %arg1: i32) -> (i32, i32, i32) {
    %c0_i32 = arith.constant 0 : i32
    %c0_i32_0 = arith.constant 0 : i32
    return %arg0, %c0_i32, %arg1 : i32, i32, i32
  }
}

</mosaic_0001>

<llo_original>
// kernel: tpu_custom_call.1
$region0: #{tpu_custom_call.1}
  #allocation0 [shape = 'u32[]', space=smem, size = 0x4, offset = 0x4, fixed_abs, tag = 'smem constant byte address 0x4 - core index']
  #allocation1 [shape = 'u32[144,128]{1,0:T(1,128)}', space=vmem, size = 0x12000, scoped, tag = 'internal scratch']
  %s0 = inlined_call_operand.hbm [shape: f32[2,4,1152], index: 0, kind: input, shape index: {}]
  %s1 = inlined_call_operand.hbm [shape: f32[2,4,1152], index: 1, kind: input, shape index: {}]
  %s2 = inlined_call_operand.vmem [shape: f32[4,4], index: 2, kind: input, shape index: {}]
  %s3 = inlined_call_operand.vmem [shape: f32[4,4], index: 3, kind: input, shape index: {}]
  %s4 = inlined_call_operand.vmem [shape: f32[4,4], index: 4, kind: input, shape index: {}]
  %s5 = inlined_call_operand.vmem [shape: f32[4,4], index: 5, kind: input, shape index: {}]
  %s6 = inlined_call_operand.vmem [shape: f32[4,1], index: 6, kind: input, shape index: {}]
  %s7 = inlined_call_operand.vmem [shape: f32[4,1], index: 7, kind: input, shape index: {}]
  %s8 = inlined_call_operand.hbm [shape: f32[2,4,1152], index: 8, kind: output, shape index: {0}]
  %s9 = inlined_call_operand.hbm [shape: f32[2,4,1152], index: 9, kind: output, shape index: {1}]
  %10 = xla_tuple %s8, %s9
  %s11 = sld [smem:[#allocation0]]
  $region81: #{tpu_custom_call.1} parent=0
    _
  %s13 = ssub.s32 1, %s11
  %s14 = scalar_select 0, %s13, %s11
  $region1: #{tpu_custom_call.1} parent=0
    #allocation2 [shape = 'u8[36864]{0}', space=vmem, size = 0x9000, scoped, tag = 'input window, operand 0']
    #allocation3 [shape = 's32[2]{0}', space=sflag, size = 0x8, scoped, tag = 'scoped memory for tpu_custom_call.1']
    #allocation4 [shape = 's32[2]{0}', space=sflag, size = 0x8, scoped, tag = 'scoped memory for tpu_custom_call.1']
    #allocation5 [shape = 'u8[36864]{0}', space=vmem, size = 0x9000, scoped, tag = 'input window, operand 1']
    #allocation6 [shape = 's32[2]{0}', space=sflag, size = 0x8, scoped, tag = 'scoped memory for tpu_custom_call.1']
    #allocation7 [shape = 'u8[36864]{0}', space=vmem, size = 0x9000, scoped, tag = 'output window, operand 0']
    #allocation8 [shape = 'u8[36864]{0}', space=vmem, size = 0x9000, scoped, tag = 'output window, operand 1']
    #allocation9 [shape = 's32[2]{0}', space=sflag, size = 0x8, scoped, tag = 'scoped memory for tpu_custom_call.1']
    %15 = vsyncpa [#allocation3], 0
    %s16 = scalar_lea.sflag [#allocation3], 1
    %17 = vsyncpa %s16, 0
    %18 = vsyncpa [#allocation6], 0
    %s19 = scalar_lea.sflag [#allocation6], 1
    %20 = vsyncpa %s19, 0
    %21 = vsyncpa [#allocation4], 0
    %s22 = scalar_lea.sflag [#allocation4], 1
    %23 = vsyncpa %s22, 0
    %24 = vsyncpa [#allocation9], 0
    %s25 = scalar_lea.sflag [#allocation9], 1
    %26 = vsyncpa %s25, 0
    loop: start=0, step=1, limit=4
    $region2: #{tpu_custom_call.1} parent=1 // loop_pre_header
      _
    $region3: #{tpu_custom_call.1} parent=1 // loop_header
      %s28 = sphi 0, %s32
      %p29 = scmp.ge.s32.totalorder %s28, 4
      %s35 = sphi 0, %s47
      %s36 = sphi 0, %s43
      %s37 = sphi 0, %s35
      %s38 = sphi 0, %s36
      %s39 = sphi 0, %s37
      %s40 = sphi 0, %s38
      %s52 = sphi 0, %s54
      %s55 = sphi 0, %s52
      %s56 = sphi 0, %s55
      %s72 = sphi 0, %s56
      %s80 = sphi 0, %s82
      %s83 = sphi 0, %s80
      %s84 = sphi 0, %s83
      %s100 = sphi 0, %s84
      %s104 = sphi 0, %s104
      %s106 = sphi 0, %s104
      %s107 = sphi 0, %s106
      %s121 = sphi 0, %s107
      %s125 = sphi 0, %s125
      %s127 = sphi 0, %s125
      %s128 = sphi 0, %s127
      %s142 = sphi 0, %s128
      %s146 = sphi 0, %s146
      %s148 = sphi 0, %s146
      %s149 = sphi 0, %s148
      %s163 = sphi 0, %s149
      %s167 = sphi 0, %s167
      %s169 = sphi 0, %s167
      %s170 = sphi 0, %s169
      %s184 = sphi 0, %s170
      %s188 = sphi 0, %s188
      %s190 = sphi 0, %s188
      %s191 = sphi 0, %s190
      %s205 = sphi 0, %s191
      %s209 = sphi 0, %s209
      %s211 = sphi 0, %s209
      %s212 = sphi 0, %s211
      %s226 = sphi 0, %s212
      %s234 = sphi 0, %s236
      %s237 = sphi 0, %s234
      %s238 = sphi 0, %s237
      %s254 = sphi 0, %s238
      %s262 = sphi 0, %s264
      %s265 = sphi 0, %s262
      %s266 = sphi 0, %s265
      %s282 = sphi 0, %s266
    $region4: #{tpu_custom_call.1} parent=1 // loop_header_branch
      %31 = sbr.rel (%p29) target = $region8
    $region5: #{tpu_custom_call.1} parent=1 // loop_body
      %s33 = ssub.s32 %s28, 1
      %s34 = ssub.s32 %s28, 2
      %s41 = sadd.s32 1, %s36
      %p42 = scmp.ge.s32.totalorder %s41, 1
      %s43 = scalar_select %p42, 0, %s41
      %s44 = sadd.s32 1, %s35
      %s45 = scalar_select %p42, %s44, %s35
      %p46 = scmp.ge.s32.totalorder %s45, 2
      %s47 = scalar_select %p46, 0, %s45
      %s48 = ssub.s32 %s35, %s47
      %s49 = ssub.s32 %s36, %s43
      %s50 = sor.u32 %s48, %s49
      %p51 = scmp.eq.s32.totalorder %s50, 0
      %s53 = sadd.s32 %s52, 1
      %s54 = scalar_select %p51, %s52, %s53
      %p57 = pneg %p51
      %p58 = scmp.eq.s32.totalorder %s28, 1
      %p59 = por %p57, %p58
      %p60 = scmp.ne.s32.totalorder %s52, %s55
      %p61 = scmp.eq.s32.totalorder %s28, 0
      %p62 = por %p60, %p61
      %p63 = scmp.ne.s32.totalorder %s52, %s55
      %p64 = scmp.eq.s32.totalorder %s33, 1
      %p65 = por %p63, %p64
      %p66 = scmp.ne.s32.totalorder %s55, %s56
      %p67 = scmp.eq.s32.totalorder %s33, 0
      %p68 = por %p66, %p67
      %p69 = scmp.ne.s32.totalorder %s55, %s56
      %p70 = scmp.eq.s32.totalorder %s34, 1
      %p71 = por %p69, %p70
      %p73 = scmp.ne.s32.totalorder %s56, %s72
      %p74 = scmp.eq.s32.totalorder %s34, 0
      %p75 = por %p73, %p74
      %s76 = ssub.s32 %s35, %s47
      %s77 = ssub.s32 %s36, %s43
      %s78 = sor.u32 %s76, %s77
      %p79 = scmp.eq.s32.totalorder %s78, 0
      %s81 = sadd.s32 %s80, 1
      %s82 = scalar_select %p79, %s80, %s81
      %p85 = pneg %p79
      %p86 = scmp.eq.s32.totalorder %s28, 1
      %p87 = por %p85, %p86
      %p88 = scmp.ne.s32.totalorder %s80, %s83
      %p89 = scmp.eq.s32.totalorder %s28, 0
      %p90 = por %p88, %p89
      %p91 = scmp.ne.s32.totalorder %s80, %s83
      %p92 = scmp.eq.s32.totalorder %s33, 1
      %p93 = por %p91, %p92
      %p94 = scmp.ne.s32.totalorder %s83, %s84
      %p95 = scmp.eq.s32.totalorder %s33, 0
      %p96 = por %p94, %p95
      %p97 = scmp.ne.s32.totalorder %s83, %s84
      %p98 = scmp.eq.s32.totalorder %s34, 1
      %p99 = por %p97, %p98
      %p101 = scmp.ne.s32.totalorder %s84, %s100
      %p102 = scmp.eq.s32.totalorder %s34, 0
      %p103 = por %p101, %p102
      %s105 = sadd.s32 %s104, 1
      %p108 = scmp.eq.s32.totalorder %s28, 1
      %p109 = scmp.ne.s32.totalorder %s104, %s106
      %p110 = scmp.eq.s32.totalorder %s28, 0
      %p111 = por %p109, %p110
      %p112 = scmp.ne.s32.totalorder %s104, %s106
      %p113 = scmp.eq.s32.totalorder %s33, 1
      %p114 = por %p112, %p113
      %p115 = scmp.ne.s32.totalorder %s106, %s107
      %p116 = scmp.eq.s32.totalorder %s33, 0
      %p117 = por %p115, %p116
      %p118 = scmp.ne.s32.totalorder %s106, %s107
      %p119 = scmp.eq.s32.totalorder %s34, 1
      %p120 = por %p118, %p119
      %p122 = scmp.ne.s32.totalorder %s107, %s121
      %p123 = scmp.eq.s32.totalorder %s34, 0
      %p124 = por %p122, %p123
      %s126 = sadd.s32 %s125, 1
      %p129 = scmp.eq.s32.totalorder %s28, 1
      %p130 = scmp.ne.s32.totalorder %s125, %s127
      %p131 = scmp.eq.s32.totalorder %s28, 0
      %p132 = por %p130, %p131
      %p133 = scmp.ne.s32.totalorder %s125, %s127
      %p134 = scmp.eq.s32.totalorder %s33, 1
      %p135 = por %p133, %p134
      %p136 = scmp.ne.s32.totalorder %s127, %s128
      %p137 = scmp.eq.s32.totalorder %s33, 0
      %p138 = por %p136, %p137
      %p139 = scmp.ne.s32.totalorder %s127, %s128
      %p140 = scmp.eq.s32.totalorder %s34, 1
      %p141 = por %p139, %p140
      %p143 = scmp.ne.s32.totalorder %s128, %s142
      %p144 = scmp.eq.s32.totalorder %s34, 0
      %p145 = por %p143, %p144
      %s147 = sadd.s32 %s146, 1
      %p150 = scmp.eq.s32.totalorder %s28, 1
      %p151 = scmp.ne.s32.totalorder %s146, %s148
      %p152 = scmp.eq.s32.totalorder %s28, 0
      %p153 = por %p151, %p152
      %p154 = scmp.ne.s32.totalorder %s146, %s148
      %p155 = scmp.eq.s32.totalorder %s33, 1
      %p156 = por %p154, %p155
      %p157 = scmp.ne.s32.totalorder %s148, %s149
      %p158 = scmp.eq.s32.totalorder %s33, 0
      %p159 = por %p157, %p158
      %p160 = scmp.ne.s32.totalorder %s148, %s149
      %p161 = scmp.eq.s32.totalorder %s34, 1
      %p162 = por %p160, %p161
      %p164 = scmp.ne.s32.totalorder %s149, %s163
      %p165 = scmp.eq.s32.totalorder %s34, 0
      %p166 = por %p164, %p165
      %s168 = sadd.s32 %s167, 1
      %p171 = scmp.eq.s32.totalorder %s28, 1
      %p172 = scmp.ne.s32.totalorder %s167, %s169
      %p173 = scmp.eq.s32.totalorder %s28, 0
      %p174 = por %p172, %p173
      %p175 = scmp.ne.s32.totalorder %s167, %s169
      %p176 = scmp.eq.s32.totalorder %s33, 1
      %p177 = por %p175, %p176
      %p178 = scmp.ne.s32.totalorder %s169, %s170
      %p179 = scmp.eq.s32.totalorder %s33, 0
      %p180 = por %p178, %p179
      %p181 = scmp.ne.s32.totalorder %s169, %s170
      %p182 = scmp.eq.s32.totalorder %s34, 1
      %p183 = por %p181, %p182
      %p185 = scmp.ne.s32.totalorder %s170, %s184
      %p186 = scmp.eq.s32.totalorder %s34, 0
      %p187 = por %p185, %p186
      %s189 = sadd.s32 %s188, 1
      %p192 = scmp.eq.s32.totalorder %s28, 1
      %p193 = scmp.ne.s32.totalorder %s188, %s190
      %p194 = scmp.eq.s32.totalorder %s28, 0
      %p195 = por %p193, %p194
      %p196 = scmp.ne.s32.totalorder %s188, %s190
      %p197 = scmp.eq.s32.totalorder %s33, 1
      %p198 = por %p196, %p197
      %p199 = scmp.ne.s32.totalorder %s190, %s191
      %p200 = scmp.eq.s32.totalorder %s33, 0
      %p201 = por %p199, %p200
      %p202 = scmp.ne.s32.totalorder %s190, %s191
      %p203 = scmp.eq.s32.totalorder %s34, 1
      %p204 = por %p202, %p203
      %p206 = scmp.ne.s32.totalorder %s191, %s205
      %p207 = scmp.eq.s32.totalorder %s34, 0
      %p208 = por %p206, %p207
      %s210 = sadd.s32 %s209, 1
      %p213 = scmp.eq.s32.totalorder %s28, 1
      %p214 = scmp.ne.s32.totalorder %s209, %s211
      %p215 = scmp.eq.s32.totalorder %s28, 0
      %p216 = por %p214, %p215
      %p217 = scmp.ne.s32.totalorder %s209, %s211
      %p218 = scmp.eq.s32.totalorder %s33, 1
      %p219 = por %p217, %p218
      %p220 = scmp.ne.s32.totalorder %s211, %s212
      %p221 = scmp.eq.s32.totalorder %s33, 0
      %p222 = por %p220, %p221
      %p223 = scmp.ne.s32.totalorder %s211, %s212
      %p224 = scmp.eq.s32.totalorder %s34, 1
      %p225 = por %p223, %p224
      %p227 = scmp.ne.s32.totalorder %s212, %s226
      %p228 = scmp.eq.s32.totalorder %s34, 0
      %p229 = por %p227, %p228
      %s230 = ssub.s32 %s35, %s47
      %s231 = ssub.s32 %s36, %s43
      %s232 = sor.u32 %s230, %s231
      %p233 = scmp.eq.s32.totalorder %s232, 0
      %s235 = sadd.s32 %s234, 1
      %s236 = scalar_select %p233, %s234, %s235
      %p239 = pneg %p233
      %p240 = scmp.eq.s32.totalorder %s28, 1
      %p241 = por %p239, %p240
      %p242 = scmp.ne.s32.totalorder %s234, %s237
      %p243 = scmp.eq.s32.totalorder %s28, 0
      %p244 = por %p242, %p243
      %p245 = scmp.ne.s32.totalorder %s234, %s237
      %p246 = scmp.eq.s32.totalorder %s33, 1
      %p247 = por %p245, %p246
      %p248 = scmp.ne.s32.totalorder %s237, %s238
      %p249 = scmp.eq.s32.totalorder %s33, 0
      %p250 = por %p248, %p249
      %p251 = scmp.ne.s32.totalorder %s237, %s238
      %p252 = scmp.eq.s32.totalorder %s34, 1
      %p253 = por %p251, %p252
      %p255 = scmp.ne.s32.totalorder %s238, %s254
      %p256 = scmp.eq.s32.totalorder %s34, 0
      %p257 = por %p255, %p256
      %s258 = ssub.s32 %s35, %s47
      %s259 = ssub.s32 %s36, %s43
      %s260 = sor.u32 %s258, %s259
      %p261 = scmp.eq.s32.totalorder %s260, 0
      %s263 = sadd.s32 %s262, 1
      %s264 = scalar_select %p261, %s262, %s263
      %p267 = pneg %p261
      %p268 = scmp.eq.s32.totalorder %s28, 1
      %p269 = por %p267, %p268
      %p270 = scmp.ne.s32.totalorder %s262, %s265
      %p271 = scmp.eq.s32.totalorder %s28, 0
      %p272 = por %p270, %p271
      %p273 = scmp.ne.s32.totalorder %s262, %s265
      %p274 = scmp.eq.s32.totalorder %s33, 1
      %p275 = por %p273, %p274
      %p276 = scmp.ne.s32.totalorder %s265, %s266
      %p277 = scmp.eq.s32.totalorder %s33, 0
      %p278 = por %p276, %p277
      %p279 = scmp.ne.s32.totalorder %s265, %s266
      %p280 = scmp.eq.s32.totalorder %s34, 1
      %p281 = por %p279, %p280
      %p283 = scmp.ne.s32.totalorder %s266, %s282
      %p284 = scmp.eq.s32.totalorder %s34, 0
      %p285 = por %p283, %p284
      %p286 = scmp.le.s32.totalorder 1, %s28
      %p287 = scmp.lt.s32.totalorder %s28, 3
      %p288 = pnand %p286, %p287
      %p289 = pneg %p288
      // Predicated region
      $region9: #{tpu_custom_call.1} parent=5 // pred_check
        _
      $region10: #{tpu_custom_call.1} parent=5 // pred_check_branch
        %291 = sbr.rel (%p288) target = $region12
      $region11: #{tpu_custom_call.1} parent=5 // pred_region
        %s292 = ssub.s32 %s28, 1
        // Predicated region
        $region13: #{tpu_custom_call.1} parent=11 // pred_check
          %p293 = pneg %p117
        $region14: #{tpu_custom_call.1} parent=11 // pred_check_branch
          %295 = sbr.rel (%p293) target = $region16
        $region15: #{tpu_custom_call.1} parent=11 // pred_region
          _
        $region16: #{tpu_custom_call.1} parent=11 // pred_fallthru
          _
        // Predicated region
        $region17: #{tpu_custom_call.1} parent=11 // pred_check
          %p296 = pneg %p138
        $region18: #{tpu_custom_call.1} parent=11 // pred_check_branch
          %298 = sbr.rel (%p296) target = $region20
        $region19: #{tpu_custom_call.1} parent=11 // pred_region
          _
        $region20: #{tpu_custom_call.1} parent=11 // pred_fallthru
          _
        // Predicated region
        $region21: #{tpu_custom_call.1} parent=11 // pred_check
          %p299 = pneg %p159
        $region22: #{tpu_custom_call.1} parent=11 // pred_check_branch
          %301 = sbr.rel (%p299) target = $region24
        $region23: #{tpu_custom_call.1} parent=11 // pred_region
          _
        $region24: #{tpu_custom_call.1} parent=11 // pred_fallthru
          _
        // Predicated region
        $region25: #{tpu_custom_call.1} parent=11 // pred_check
          %p302 = pneg %p180
        $region26: #{tpu_custom_call.1} parent=11 // pred_check_branch
          %304 = sbr.rel (%p302) target = $region28
        $region27: #{tpu_custom_call.1} parent=11 // pred_region
          _
        $region28: #{tpu_custom_call.1} parent=11 // pred_fallthru
          _
        // Predicated region
        $region29: #{tpu_custom_call.1} parent=11 // pred_check
          %p305 = pneg %p201
        $region30: #{tpu_custom_call.1} parent=11 // pred_check_branch
          %307 = sbr.rel (%p305) target = $region32
        $region31: #{tpu_custom_call.1} parent=11 // pred_region
          _
        $region32: #{tpu_custom_call.1} parent=11 // pred_fallthru
          _
        // Predicated region
        $region33: #{tpu_custom_call.1} parent=11 // pred_check
          %p308 = pneg %p222
        $region34: #{tpu_custom_call.1} parent=11 // pred_check_branch
          %310 = sbr.rel (%p308) target = $region36
        $region35: #{tpu_custom_call.1} parent=11 // pred_region
          _
        $region36: #{tpu_custom_call.1} parent=11 // pred_fallthru
          _
      $region12: #{tpu_custom_call.1} parent=5 // pred_fallthru
        _
      %p311 = scmp.lt.s32.totalorder %s28, 2
      // Predicated region
      $region37: #{tpu_custom_call.1} parent=5 // pred_check
        %p312 = pneg %p311
      $region38: #{tpu_custom_call.1} parent=5 // pred_check_branch
        %314 = sbr.rel (%p312) target = $region40
      $region39: #{tpu_custom_call.1} parent=5 // pred_region
        // Predicated region
        $region41: #{tpu_custom_call.1} parent=39 // pred_check
          %p315 = pneg %p62
        $region42: #{tpu_custom_call.1} parent=39 // pred_check_branch
          %317 = sbr.rel (%p315) target = $region44
        $region43: #{tpu_custom_call.1} parent=39 // pred_region
          %s318 = sand.u32 %s52, 1
          %s319 = scalar_lea.sflag [#allocation3], %s318
          %s320 = sand.u32 %s52, 1
          %s321 = smul.addr %s320, 36
          %s322 = scalar_lea.vmem [#allocation2], %s321
          %s323 = smul.u32 9, %s36
          %s325 = ssub.s32 576, 576
          %326 = vsyncadd %s319, %s325
          %s327 = smul.addr %s35, 9
          %s328 = sadd.s32 %s323, %s327
          %s329 = smul.addr %s328, 64
          %s330 = scalar_lea.hbm %s0, %s329
          %s332 = sshll.u32 %s322, 4
          %s333 = int_to_ptr.vmem [resolvable:$true] %s332
          %335 = dma.hbm_to_vmem [thread:$0]  %s330, 576, %s333, %s319
        $region44: #{tpu_custom_call.1} parent=39 // pred_fallthru
          _
        // Predicated region
        $region45: #{tpu_custom_call.1} parent=39 // pred_check
          %p336 = pneg %p90
        $region46: #{tpu_custom_call.1} parent=39 // pred_check_branch
          %338 = sbr.rel (%p336) target = $region48
        $region47: #{tpu_custom_call.1} parent=39 // pred_region
          %s339 = sand.u32 %s80, 1
          %s340 = scalar_lea.sflag [#allocation6], %s339
          %s341 = sand.u32 %s80, 1
          %s342 = smul.addr %s341, 36
          %s343 = scalar_lea.vmem [#allocation5], %s342
          %s344 = smul.u32 9, %s36
          %s346 = ssub.s32 576, 576
          %347 = vsyncadd %s340, %s346
          %s348 = smul.addr %s35, 9
          %s349 = sadd.s32 %s344, %s348
          %s350 = smul.addr %s349, 64
          %s351 = scalar_lea.hbm %s1, %s350
          %s353 = sshll.u32 %s343, 4
          %s354 = int_to_ptr.vmem [resolvable:$true] %s353
          %356 = dma.hbm_to_vmem [thread:$0]  %s351, 576, %s354, %s340
        $region48: #{tpu_custom_call.1} parent=39 // pred_fallthru
          _
      $region40: #{tpu_custom_call.1} parent=5 // pred_fallthru
        _
      %p357 = scmp.le.s32.totalorder 1, %s28
      %p358 = scmp.lt.s32.totalorder %s28, 3
      %p359 = pnand %p357, %p358
      %p360 = pneg %p359
      // Predicated region
      $region49: #{tpu_custom_call.1} parent=5 // pred_check
        _
      $region50: #{tpu_custom_call.1} parent=5 // pred_check_branch
        %362 = sbr.rel (%p359) target = $region52
      $region51: #{tpu_custom_call.1} parent=5 // pred_region
        %s363 = ssub.s32 %s28, 1
        %s364 = sand.u32 %s55, 1
        %s365 = scalar_lea.sflag [#allocation3], %s364
        %s366 = sand.u32 %s55, 1
        %s367 = smul.addr %s366, 36
        %s368 = scalar_lea.vmem [#allocation2], %s367
        // Predicated region
        $region53: #{tpu_custom_call.1} parent=51 // pred_check
          %p369 = pneg %p68
        $region54: #{tpu_custom_call.1} parent=51 // pred_check_branch
          %371 = sbr.rel (%p369) target = $region56
        $region55: #{tpu_custom_call.1} parent=51 // pred_region
          %372 = dma.done %s365, 576
        $region56: #{tpu_custom_call.1} parent=51 // pred_fallthru
          _
        %s373 = sand.u32 %s83, 1
        %s374 = scalar_lea.sflag [#allocation6], %s373
        %s375 = sand.u32 %s83, 1
        %s376 = smul.addr %s375, 36
        %s377 = scalar_lea.vmem [#allocation5], %s376
        // Predicated region
        $region57: #{tpu_custom_call.1} parent=51 // pred_check
          %p378 = pneg %p96
        $region58: #{tpu_custom_call.1} parent=51 // pred_check_branch
          %380 = sbr.rel (%p378) target = $region60
        $region59: #{tpu_custom_call.1} parent=51 // pred_region
          %381 = dma.done %s374, 576
        $region60: #{tpu_custom_call.1} parent=51 // pred_fallthru
          _
        %s382 = sand.u32 %s55, 1
        %s383 = scalar_lea.sflag [#allocation3], %s382
        %s384 = sand.u32 %s55, 1
        %s385 = smul.addr %s384, 36
        %s386 = scalar_lea.vmem [#allocation2], %s385
        %p387 = pneg %p68
        %p388 = pneg %p65
        %s389 = sand.u32 %s83, 1
        %s390 = scalar_lea.sflag [#allocation6], %s389
        %s391 = sand.u32 %s83, 1
        %s392 = smul.addr %s391, 36
        %s393 = scalar_lea.vmem [#allocation5], %s392
        %p394 = pneg %p96
        %p395 = pneg %p93
        %p396 = pneg %p117
        %p397 = pneg %p114
        %p398 = pneg %p138
        %p399 = pneg %p135
        %p400 = pneg %p159
        %p401 = pneg %p156
        %p402 = pneg %p180
        %p403 = pneg %p177
        %p404 = pneg %p201
        %p405 = pneg %p198
        %p406 = pneg %p222
        %p407 = pneg %p219
        %p408 = pneg %p250
        %p409 = pneg %p247
        %s410 = sand.u32 %s237, 1
        %s411 = scalar_lea.sflag [#allocation4], %s410
        %s412 = sand.u32 %s237, 1
        %s413 = smul.addr %s412, 36
        %s414 = scalar_lea.vmem [#allocation7], %s413
        %p415 = pneg %p278
        %p416 = pneg %p275
        %s417 = sand.u32 %s265, 1
        %s418 = scalar_lea.sflag [#allocation9], %s417
        %s419 = sand.u32 %s265, 1
        %s420 = smul.addr %s419, 36
        %s421 = scalar_lea.vmem [#allocation8], %s420
        %s422 = smul.u32 9, %s38
        %s423 = smul.u32 9, %s38
        %s424 = smul.u32 9, %s38
        %s425 = smul.u32 9, %s38
        %v426 = vld [vmem:[%s368] sm:$0xff]
        %v427 = vld [vmem:[%s368 + $0x8] sm:$0xff]
        %v428 = vld [vmem:[%s368 + $0x10] sm:$0xff]
        %v429 = vld [vmem:[%s368 + $0x18] sm:$0xff]
        %v430 = vld [vmem:[%s368 + $0x20] sm:$0xf]
        %v431 = vld [vmem:[%s377] sm:$0xff]
        %v432 = vld [vmem:[%s377 + $0x8] sm:$0xff]
        %v433 = vld [vmem:[%s377 + $0x10] sm:$0xff]
        %v434 = vld [vmem:[%s377 + $0x18] sm:$0xff]
        %v435 = vld [vmem:[%s377 + $0x20] sm:$0xf]
        %v436 = vld [vmem:[%s2] sm:$0xf]
        %v437 = vld [vmem:[%s3] sm:$0xf]
        %v443 = vcombine.high %v431, %v431
        %v444 = vcombine.high %v432, %v432
        %v445 = vcombine.high %v433, %v433
        %v446 = vcombine.high %v434, %v434
        %vm447 = vcmask 31744
        %v449 = vsel %vm447, %v437, 0
        %vm451 = vcmask 1043456
        %v452 = vsel %vm451, %v431, 0
        %v454 = vsel %vm451, %v443, 0
        %v456 = vsel %vm451, %v432, 0
        %v458 = vsel %vm451, %v444, 0
        %v460 = vsel %vm451, %v433, 0
        %v462 = vsel %vm451, %v445, 0
        %v464 = vsel %vm451, %v434, 0
        %v466 = vsel %vm451, %v446, 0
        %v468 = vsel %vm451, %v435, 0
        %470 = vmatprep.subr.mxu0 %v454
        %471 = vmatpush1.msra.mxu0 %v452
        %472 = vmatprep.subr.mxu0 0.0
        %473 = vmatpush1.msra.mxu0 0.0
        %474 = vmatprep.subr.mxu0 0.0
        %475 = vmatpush1.msra.mxu0 0.0
        %476 = vmatprep.subr.mxu0 0.0
        %477 = vmatpush1.msra.mxu0 0.0
        %478 = vmatprep.subr.mxu0 0.0
        %479 = vmatpush1.msra.mxu0 0.0
        %480 = vmatprep.subr.mxu0 0.0
        %481 = vmatpush1.msra.mxu0 0.0
        %482 = vmatprep.subr.mxu0 0.0
        %483 = vmatpush1.msra.mxu0 0.0
        %484 = vmatprep.subr.mxu0 0.0
        %485 = vmatpush1.msra.mxu0 0.0
        %486 = vmatprep.subr.mxu0 0.0
        %487 = vmatpush1.msra.mxu0 0.0
        %488 = vmatprep.subr.mxu0 0.0
        %489 = vmatpush1.msra.mxu0 0.0
        %490 = vmatprep.subr.mxu0 0.0
        %491 = vmatpush1.msra.mxu0 0.0
        %492 = vmatprep.subr.mxu0 0.0
        %493 = vmatpush1.msra.mxu0 0.0
        %494 = vmatprep.subr.mxu0 0.0
        %495 = vmatpush1.msra.mxu0 0.0
        %496 = vmatprep.subr.mxu0 0.0
        %497 = vmatpush1.msra.mxu0 0.0
        %498 = vmatprep.subr.mxu0 0.0
        %499 = vmatpush1.msra.mxu0 0.0
        %500 = vmatprep.subr.mxu0 0.0
        %501 = vmatpush1.msra.mxu0 0.0
        %502 = vmatprep.subr.mxu0 0.0
        %503 = vmatpush1.msra.mxu0 0.0
        %504 = vmatprep.subr.mxu0 0.0
        %505 = vmatpush1.msra.mxu0 0.0
        %506 = vmatprep.subr.mxu0 0.0
        %507 = vmatpush1.msra.mxu0 0.0
        %508 = vmatprep.subr.mxu0 0.0
        %509 = vmatpush1.msra.mxu0 0.0
        %510 = vmatprep.subr.mxu0 0.0
        %511 = vmatpush1.msra.mxu0 0.0
        %512 = vmatprep.subr.mxu0 0.0
        %513 = vmatpush1.msra.mxu0 0.0
        %514 = vmatprep.subr.mxu0 0.0
        %515 = vmatpush1.msra.mxu0 0.0
        %516 = vmatprep.subr.mxu0 0.0
        %517 = vmatpush1.msra.mxu0 0.0
        %518 = vmatprep.subr.mxu0 0.0
        %519 = vmatpush1.msra.mxu0 0.0
        %520 = vmatprep.subr.mxu0 0.0
        %521 = vmatpush1.msra.mxu0 0.0
        %522 = vmatprep.subr.mxu0 0.0
        %523 = vmatpush1.msra.mxu0 0.0
        %524 = vmatprep.subr.mxu0 0.0
        %525 = vmatpush1.msra.mxu0 0.0
        %526 = vmatprep.subr.mxu0 0.0
        %527 = vmatpush1.msra.mxu0 0.0
        %528 = vmatprep.subr.mxu0 0.0
        %529 = vmatpush1.msra.mxu0 0.0
        %530 = vmatprep.subr.mxu0 0.0
        %531 = vmatpush1.msra.mxu0 0.0
        %532 = vmatprep.subr.mxu0 0.0
        %533 = vmatpush1.msra.mxu0 0.0
        %534 = vmatprep.mubr.f32.mxu0 0.0
        %535 = vmatmul.mubr.f32.gmra.mrb[0].mxu0 %v449
        %v536 = vpop.f32.mrb[0].mxu0
        %v537 = vadd.f32 0.0, %v536
        %v538 = vpop.f32.mrb[0].mxu0
        %v539 = vadd.f32 0.0, %v538
        %540 = vdwg.mxu0
        %541 = vmatprep.subr.mxu0 %v458
        %542 = vmatpush1.msra.mxu0 %v456
        %543 = vmatprep.subr.mxu0 0.0
        %544 = vmatpush1.msra.mxu0 0.0
        %545 = vmatprep.subr.mxu0 0.0
        %546 = vmatpush1.msra.mxu0 0.0
        %547 = vmatprep.subr.mxu0 0.0
        %548 = vmatpush1.msra.mxu0 0.0
        %549 = vmatprep.subr.mxu0 0.0
        %550 = vmatpush1.msra.mxu0 0.0
        %551 = vmatprep.subr.mxu0 0.0
        %552 = vmatpush1.msra.mxu0 0.0
        %553 = vmatprep.subr.mxu0 0.0
        %554 = vmatpush1.msra.mxu0 0.0
        %555 = vmatprep.subr.mxu0 0.0
        %556 = vmatpush1.msra.mxu0 0.0
        %557 = vmatprep.subr.mxu0 0.0
        %558 = vmatpush1.msra.mxu0 0.0
        %559 = vmatprep.subr.mxu0 0.0
        %560 = vmatpush1.msra.mxu0 0.0
        %561 = vmatprep.subr.mxu0 0.0
        %562 = vmatpush1.msra.mxu0 0.0
        %563 = vmatprep.subr.mxu0 0.0
        %564 = vmatpush1.msra.mxu0 0.0
        %565 = vmatprep.subr.mxu0 0.0
        %566 = vmatpush1.msra.mxu0 0.0
        %567 = vmatprep.subr.mxu0 0.0
        %568 = vmatpush1.msra.mxu0 0.0
        %569 = vmatprep.subr.mxu0 0.0
        %570 = vmatpush1.msra.mxu0 0.0
        %571 = vmatprep.subr.mxu0 0.0
        %572 = vmatpush1.msra.mxu0 0.0
        %573 = vmatprep.subr.mxu0 0.0
        %574 = vmatpush1.msra.mxu0 0.0
        %575 = vmatprep.subr.mxu0 0.0
        %576 = vmatpush1.msra.mxu0 0.0
        %577 = vmatprep.subr.mxu0 0.0
        %578 = vmatpush1.msra.mxu0 0.0
        %579 = vmatprep.subr.mxu0 0.0
        %580 = vmatpush1.msra.mxu0 0.0
        %581 = vmatprep.subr.mxu0 0.0
        %582 = vmatpush1.msra.mxu0 0.0
        %583 = vmatprep.subr.mxu0 0.0
        %584 = vmatpush1.msra.mxu0 0.0
        %585 = vmatprep.subr.mxu0 0.0
        %586 = vmatpush1.msra.mxu0 0.0
        %587 = vmatprep.subr.mxu0 0.0
        %588 = vmatpush1.msra.mxu0 0.0
        %589 = vmatprep.subr.mxu0 0.0
        %590 = vmatpush1.msra.mxu0 0.0
        %591 = vmatprep.subr.mxu0 0.0
        %592 = vmatpush1.msra.mxu0 0.0
        %593 = vmatprep.subr.mxu0 0.0
        %594 = vmatpush1.msra.mxu0 0.0
        %595 = vmatprep.subr.mxu0 0.0
        %596 = vmatpush1.msra.mxu0 0.0
        %597 = vmatprep.subr.mxu0 0.0
        %598 = vmatpush1.msra.mxu0 0.0
        %599 = vmatprep.subr.mxu0 0.0
        %600 = vmatpush1.msra.mxu0 0.0
        %601 = vmatprep.subr.mxu0 0.0
        %602 = vmatpush1.msra.mxu0 0.0
        %603 = vmatprep.subr.mxu0 0.0
        %604 = vmatpush1.msra.mxu0 0.0
        %605 = vmatprep.mubr.f32.mxu0 0.0
        %606 = vmatmul.mubr.f32.gmra.mrb[0].mxu0 %v449
        %v607 = vpop.f32.mrb[0].mxu0
        %v608 = vadd.f32 0.0, %v607
        %v609 = vpop.f32.mrb[0].mxu0
        %v610 = vadd.f32 0.0, %v609
        %611 = vdwg.mxu0
        %612 = vmatprep.subr.mxu0 %v462
        %613 = vmatpush1.msra.mxu0 %v460
        %614 = vmatprep.subr.mxu0 0.0
        %615 = vmatpush1.msra.mxu0 0.0
        %616 = vmatprep.subr.mxu0 0.0
        %617 = vmatpush1.msra.mxu0 0.0
        %618 = vmatprep.subr.mxu0 0.0
        %619 = vmatpush1.msra.mxu0 0.0
        %620 = vmatprep.subr.mxu0 0.0
        %621 = vmatpush1.msra.mxu0 0.0
        %622 = vmatprep.subr.mxu0 0.0
        %623 = vmatpush1.msra.mxu0 0.0
        %624 = vmatprep.subr.mxu0 0.0
        %625 = vmatpush1.msra.mxu0 0.0
        %626 = vmatprep.subr.mxu0 0.0
        %627 = vmatpush1.msra.mxu0 0.0
        %628 = vmatprep.subr.mxu0 0.0
        %629 = vmatpush1.msra.mxu0 0.0
        %630 = vmatprep.subr.mxu0 0.0
        %631 = vmatpush1.msra.mxu0 0.0
        %632 = vmatprep.subr.mxu0 0.0
        %633 = vmatpush1.msra.mxu0 0.0
        %634 = vmatprep.subr.mxu0 0.0
        %635 = vmatpush1.msra.mxu0 0.0
        %636 = vmatprep.subr.mxu0 0.0
        %637 = vmatpush1.msra.mxu0 0.0
        %638 = vmatprep.subr.mxu0 0.0
        %639 = vmatpush1.msra.mxu0 0.0
        %640 = vmatprep.subr.mxu0 0.0
        %641 = vmatpush1.msra.mxu0 0.0
        %642 = vmatprep.subr.mxu0 0.0
        %643 = vmatpush1.msra.mxu0 0.0
        %644 = vmatprep.subr.mxu0 0.0
        %645 = vmatpush1.msra.mxu0 0.0
        %646 = vmatprep.subr.mxu0 0.0
        %647 = vmatpush1.msra.mxu0 0.0
        %648 = vmatprep.subr.mxu0 0.0
        %649 = vmatpush1.msra.mxu0 0.0
        %650 = vmatprep.subr.mxu0 0.0
        %651 = vmatpush1.msra.mxu0 0.0
        %652 = vmatprep.subr.mxu0 0.0
        %653 = vmatpush1.msra.mxu0 0.0
        %654 = vmatprep.subr.mxu0 0.0
        %655 = vmatpush1.msra.mxu0 0.0
        %656 = vmatprep.subr.mxu0 0.0
        %657 = vmatpush1.msra.mxu0 0.0
        %658 = vmatprep.subr.mxu0 0.0
        %659 = vmatpush1.msra.mxu0 0.0
        %660 = vmatprep.subr.mxu0 0.0
        %661 = vmatpush1.msra.mxu0 0.0
        %662 = vmatprep.subr.mxu0 0.0
        %663 = vmatpush1.msra.mxu0 0.0
        %664 = vmatprep.subr.mxu0 0.0
        %665 = vmatpush1.msra.mxu0 0.0
        %666 = vmatprep.subr.mxu0 0.0
        %667 = vmatpush1.msra.mxu0 0.0
        %668 = vmatprep.subr.mxu0 0.0
        %669 = vmatpush1.msra.mxu0 0.0
        %670 = vmatprep.subr.mxu0 0.0
        %671 = vmatpush1.msra.mxu0 0.0
        %672 = vmatprep.subr.mxu0 0.0
        %673 = vmatpush1.msra.mxu0 0.0
        %674 = vmatprep.subr.mxu0 0.0
        %675 = vmatpush1.msra.mxu0 0.0
        %676 = vmatprep.mubr.f32.mxu0 0.0
        %677 = vmatmul.mubr.f32.gmra.mrb[0].mxu0 %v449
        %v678 = vpop.f32.mrb[0].mxu0
        %v679 = vadd.f32 0.0, %v678
        %v680 = vpop.f32.mrb[0].mxu0
        %v681 = vadd.f32 0.0, %v680
        %682 = vdwg.mxu0
        %683 = vmatprep.subr.mxu0 %v466
        %684 = vmatpush1.msra.mxu0 %v464
        %685 = vmatprep.subr.mxu0 0.0
        %686 = vmatpush1.msra.mxu0 0.0
        %687 = vmatprep.subr.mxu0 0.0
        %688 = vmatpush1.msra.mxu0 0.0
        %689 = vmatprep.subr.mxu0 0.0
        %690 = vmatpush1.msra.mxu0 0.0
        %691 = vmatprep.subr.mxu0 0.0
        %692 = vmatpush1.msra.mxu0 0.0
        %693 = vmatprep.subr.mxu0 0.0
        %694 = vmatpush1.msra.mxu0 0.0
        %695 = vmatprep.subr.mxu0 0.0
        %696 = vmatpush1.msra.mxu0 0.0
        %697 = vmatprep.subr.mxu0 0.0
        %698 = vmatpush1.msra.mxu0 0.0
        %699 = vmatprep.subr.mxu0 0.0
        %700 = vmatpush1.msra.mxu0 0.0
        %701 = vmatprep.subr.mxu0 0.0
        %702 = vmatpush1.msra.mxu0 0.0
        %703 = vmatprep.subr.mxu0 0.0
        %704 = vmatpush1.msra.mxu0 0.0
        %705 = vmatprep.subr.mxu0 0.0
        %706 = vmatpush1.msra.mxu0 0.0
        %707 = vmatprep.subr.mxu0 0.0
        %708 = vmatpush1.msra.mxu0 0.0
        %709 = vmatprep.subr.mxu0 0.0
        %710 = vmatpush1.msra.mxu0 0.0
        %711 = vmatprep.subr.mxu0 0.0
        %712 = vmatpush1.msra.mxu0 0.0
        %713 = vmatprep.subr.mxu0 0.0
        %714 = vmatpush1.msra.mxu0 0.0
        %715 = vmatprep.subr.mxu0 0.0
        %716 = vmatpush1.msra.mxu0 0.0
        %717 = vmatprep.subr.mxu0 0.0
        %718 = vmatpush1.msra.mxu0 0.0
        %719 = vmatprep.subr.mxu0 0.0
        %720 = vmatpush1.msra.mxu0 0.0
        %721 = vmatprep.subr.mxu0 0.0
        %722 = vmatpush1.msra.mxu0 0.0
        %723 = vmatprep.subr.mxu0 0.0
        %724 = vmatpush1.msra.mxu0 0.0
        %725 = vmatprep.subr.mxu0 0.0
        %726 = vmatpush1.msra.mxu0 0.0
        %727 = vmatprep.subr.mxu0 0.0
        %728 = vmatpush1.msra.mxu0 0.0
        %729 = vmatprep.subr.mxu0 0.0
        %730 = vmatpush1.msra.mxu0 0.0
        %731 = vmatprep.subr.mxu0 0.0
        %732 = vmatpush1.msra.mxu0 0.0
        %733 = vmatprep.subr.mxu0 0.0
        %734 = vmatpush1.msra.mxu0 0.0
        %735 = vmatprep.subr.mxu0 0.0
        %736 = vmatpush1.msra.mxu0 0.0
        %737 = vmatprep.subr.mxu0 0.0
        %738 = vmatpush1.msra.mxu0 0.0
        %739 = vmatprep.subr.mxu0 0.0
        %740 = vmatpush1.msra.mxu0 0.0
        %741 = vmatprep.subr.mxu0 0.0
        %742 = vmatpush1.msra.mxu0 0.0
        %743 = vmatprep.subr.mxu0 0.0
        %744 = vmatpush1.msra.mxu0 0.0
        %745 = vmatprep.subr.mxu0 0.0
        %746 = vmatpush1.msra.mxu0 0.0
        %747 = vmatprep.mubr.f32.mxu0 0.0
        %748 = vmatmul.mubr.f32.gmra.mrb[0].mxu0 %v449
        %v749 = vpop.f32.mrb[0].mxu0
        %v750 = vadd.f32 0.0, %v749
        %v751 = vpop.f32.mrb[0].mxu0
        %v752 = vadd.f32 0.0, %v751
        %753 = vdwg.mxu0
        %754 = vmatprep.subr.mxu0 0.0
        %755 = vmatpush1.msra.mxu0 %v468
        %756 = vmatprep.subr.mxu0 0.0
        %757 = vmatpush1.msra.mxu0 0.0
        %758 = vmatprep.subr.mxu0 0.0
        %759 = vmatpush1.msra.mxu0 0.0
        %760 = vmatprep.subr.mxu0 0.0
        %761 = vmatpush1.msra.mxu0 0.0
        %762 = vmatprep.subr.mxu0 0.0
        %763 = vmatpush1.msra.mxu0 0.0
        %764 = vmatprep.subr.mxu0 0.0
        %765 = vmatpush1.msra.mxu0 0.0
        %766 = vmatprep.subr.mxu0 0.0
        %767 = vmatpush1.msra.mxu0 0.0
        %768 = vmatprep.subr.mxu0 0.0
        %769 = vmatpush1.msra.mxu0 0.0
        %770 = vmatprep.subr.mxu0 0.0
        %771 = vmatpush1.msra.mxu0 0.0
        %772 = vmatprep.subr.mxu0 0.0
        %773 = vmatpush1.msra.mxu0 0.0
        %774 = vmatprep.subr.mxu0 0.0
        %775 = vmatpush1.msra.mxu0 0.0
        %776 = vmatprep.subr.mxu0 0.0
        %777 = vmatpush1.msra.mxu0 0.0
        %778 = vmatprep.subr.mxu0 0.0
        %779 = vmatpush1.msra.mxu0 0.0
        %780 = vmatprep.subr.mxu0 0.0
        %781 = vmatpush1.msra.mxu0 0.0
        %782 = vmatprep.subr.mxu0 0.0
        %783 = vmatpush1.msra.mxu0 0.0
        %784 = vmatprep.subr.mxu0 0.0
        %785 = vmatpush1.msra.mxu0 0.0
        %786 = vmatprep.subr.mxu0 0.0
        %787 = vmatpush1.msra.mxu0 0.0
        %788 = vmatprep.subr.mxu0 0.0
        %789 = vmatpush1.msra.mxu0 0.0
        %790 = vmatprep.subr.mxu0 0.0
        %791 = vmatpush1.msra.mxu0 0.0
        %792 = vmatprep.subr.mxu0 0.0
        %793 = vmatpush1.msra.mxu0 0.0
        %794 = vmatprep.subr.mxu0 0.0
        %795 = vmatpush1.msra.mxu0 0.0
        %796 = vmatprep.subr.mxu0 0.0
        %797 = vmatpush1.msra.mxu0 0.0
        %798 = vmatprep.subr.mxu0 0.0
        %799 = vmatpush1.msra.mxu0 0.0
        %800 = vmatprep.subr.mxu0 0.0
        %801 = vmatpush1.msra.mxu0 0.0
        %802 = vmatprep.subr.mxu0 0.0
        %803 = vmatpush1.msra.mxu0 0.0
        %804 = vmatprep.subr.mxu0 0.0
        %805 = vmatpush1.msra.mxu0 0.0
        %806 = vmatprep.subr.mxu0 0.0
        %807 = vmatpush1.msra.mxu0 0.0
        %808 = vmatprep.subr.mxu0 0.0
        %809 = vmatpush1.msra.mxu0 0.0
        %810 = vmatprep.subr.mxu0 0.0
        %811 = vmatpush1.msra.mxu0 0.0
        %812 = vmatprep.subr.mxu0 0.0
        %813 = vmatpush1.msra.mxu0 0.0
        %814 = vmatprep.subr.mxu0 0.0
        %815 = vmatpush1.msra.mxu0 0.0
        %816 = vmatprep.subr.mxu0 0.0
        %817 = vmatpush1.msra.mxu0 0.0
        %818 = vmatprep.mubr.f32.mxu0 0.0
        %819 = vmatmul.mubr.f32.gmra.mrb[0].mxu0 %v449
        %v820 = vpop.f32.mrb[0].mxu0
        %v821 = vadd.f32 0.0, %v820
        %v822 = vpop.f32.mrb[0].mxu0
        %823 = vdwg.mxu0
        %v829 = vcombine.high %v426, %v426
        %v830 = vcombine.high %v427, %v427
        %v831 = vcombine.high %v428, %v428
        %v832 = vcombine.high %v429, %v429
        %v834 = vsel %vm447, %v436, 0
        %v836 = vsel %vm451, %v426, 0
        %v838 = vsel %vm451, %v829, 0
        %v840 = vsel %vm451, %v427, 0
        %v842 = vsel %vm451, %v830, 0
        %v844 = vsel %vm451, %v428, 0
        %v846 = vsel %vm451, %v831, 0
        %v848 = vsel %vm451, %v429, 0
        %v850 = vsel %vm451, %v832, 0
        %v852 = vsel %vm451, %v430, 0
        %854 = vmatprep.subr.mxu0 %v838
        %855 = vmatpush1.msra.mxu0 %v836
        %856 = vmatprep.subr.mxu0 0.0
        %857 = vmatpush1.msra.mxu0 0.0
        %858 = vmatprep.subr.mxu0 0.0
        %859 = vmatpush1.msra.mxu0 0.0
        %860 = vmatprep.subr.mxu0 0.0
        %861 = vmatpush1.msra.mxu0 0.0
        %862 = vmatprep.subr.mxu0 0.0
        %863 = vmatpush1.msra.mxu0 0.0
        %864 = vmatprep.subr.mxu0 0.0
        %865 = vmatpush1.msra.mxu0 0.0
        %866 = vmatprep.subr.mxu0 0.0
        %867 = vmatpush1.msra.mxu0 0.0
        %868 = vmatprep.subr.mxu0 0.0
        %869 = vmatpush1.msra.mxu0 0.0
        %870 = vmatprep.subr.mxu0 0.0
        %871 = vmatpush1.msra.mxu0 0.0
        %872 = vmatprep.subr.mxu0 0.0
        %873 = vmatpush1.msra.mxu0 0.0
        %874 = vmatprep.subr.mxu0 0.0
        %875 = vmatpush1.msra.mxu0 0.0
        %876 = vmatprep.subr.mxu0 0.0
        %877 = vmatpush1.msra.mxu0 0.0
        %878 = vmatprep.subr.mxu0 0.0
        %879 = vmatpush1.msra.mxu0 0.0
        %880 = vmatprep.subr.mxu0 0.0
        %881 = vmatpush1.msra.mxu0 0.0
        %882 = vmatprep.subr.mxu0 0.0
        %883 = vmatpush1.msra.mxu0 0.0
        %884 = vmatprep.subr.mxu0 0.0
        %885 = vmatpush1.msra.mxu0 0.0
        %886 = vmatprep.subr.mxu0 0.0
        %887 = vmatpush1.msra.mxu0 0.0
        %888 = vmatprep.subr.mxu0 0.0
        %889 = vmatpush1.msra.mxu0 0.0
        %890 = vmatprep.subr.mxu0 0.0
        %891 = vmatpush1.msra.mxu0 0.0
        %892 = vmatprep.subr.mxu0 0.0
        %893 = vmatpush1.msra.mxu0 0.0
        %894 = vmatprep.subr.mxu0 0.0
        %895 = vmatpush1.msra.mxu0 0.0
        %896 = vmatprep.subr.mxu0 0.0
        %897 = vmatpush1.msra.mxu0 0.0
        %898 = vmatprep.subr.mxu0 0.0
        %899 = vmatpush1.msra.mxu0 0.0
        %900 = vmatprep.subr.mxu0 0.0
        %901 = vmatpush1.msra.mxu0 0.0
        %902 = vmatprep.subr.mxu0 0.0
        %903 = vmatpush1.msra.mxu0 0.0
        %904 = vmatprep.subr.mxu0 0.0
        %905 = vmatpush1.msra.mxu0 0.0
        %906 = vmatprep.subr.mxu0 0.0
        %907 = vmatpush1.msra.mxu0 0.0
        %908 = vmatprep.subr.mxu0 0.0
        %909 = vmatpush1.msra.mxu0 0.0
        %910 = vmatprep.subr.mxu0 0.0
        %911 = vmatpush1.msra.mxu0 0.0
        %912 = vmatprep.subr.mxu0 0.0
        %913 = vmatpush1.msra.mxu0 0.0
        %914 = vmatprep.subr.mxu0 0.0
        %915 = vmatpush1.msra.mxu0 0.0
        %916 = vmatprep.subr.mxu0 0.0
        %917 = vmatpush1.msra.mxu0 0.0
        %918 = vmatprep.mubr.f32.mxu0 0.0
        %919 = vmatmul.mubr.f32.gmra.mrb[0].mxu0 %v834
        %v920 = vpop.f32.mrb[0].mxu0
        %v921 = vadd.f32 %v537, %v920
        %v922 = vpop.f32.mrb[0].mxu0
        %v923 = vadd.f32 %v539, %v922
        %924 = vdwg.mxu0
        %925 = vmatprep.subr.mxu0 %v842
        %926 = vmatpush1.msra.mxu0 %v840
        %927 = vmatprep.subr.mxu0 0.0
        %928 = vmatpush1.msra.mxu0 0.0
        %929 = vmatprep.subr.mxu0 0.0
        %930 = vmatpush1.msra.mxu0 0.0
        %931 = vmatprep.subr.mxu0 0.0
        %932 = vmatpush1.msra.mxu0 0.0
        %933 = vmatprep.subr.mxu0 0.0
        %934 = vmatpush1.msra.mxu0 0.0
        %935 = vmatprep.subr.mxu0 0.0
        %936 = vmatpush1.msra.mxu0 0.0
        %937 = vmatprep.subr.mxu0 0.0
        %938 = vmatpush1.msra.mxu0 0.0
        %939 = vmatprep.subr.mxu0 0.0
        %940 = vmatpush1.msra.mxu0 0.0
        %941 = vmatprep.subr.mxu0 0.0
        %942 = vmatpush1.msra.mxu0 0.0
        %943 = vmatprep.subr.mxu0 0.0
        %944 = vmatpush1.msra.mxu0 0.0
        %945 = vmatprep.subr.mxu0 0.0
        %946 = vmatpush1.msra.mxu0 0.0
        %947 = vmatprep.subr.mxu0 0.0
        %948 = vmatpush1.msra.mxu0 0.0
        %949 = vmatprep.subr.mxu0 0.0
        %950 = vmatpush1.msra.mxu0 0.0
        %951 = vmatprep.subr.mxu0 0.0
        %952 = vmatpush1.msra.mxu0 0.0
        %953 = vmatprep.subr.mxu0 0.0
        %954 = vmatpush1.msra.mxu0 0.0
        %955 = vmatprep.subr.mxu0 0.0
        %956 = vmatpush1.msra.mxu0 0.0
        %957 = vmatprep.subr.mxu0 0.0
        %958 = vmatpush1.msra.mxu0 0.0
        %959 = vmatprep.subr.mxu0 0.0
        %960 = vmatpush1.msra.mxu0 0.0
        %961 = vmatprep.subr.mxu0 0.0
        %962 = vmatpush1.msra.mxu0 0.0
        %963 = vmatprep.subr.mxu0 0.0
        %964 = vmatpush1.msra.mxu0 0.0
        %965 = vmatprep.subr.mxu0 0.0
        %966 = vmatpush1.msra.mxu0 0.0
        %967 = vmatprep.subr.mxu0 0.0
        %968 = vmatpush1.msra.mxu0 0.0
        %969 = vmatprep.subr.mxu0 0.0
        %970 = vmatpush1.msra.mxu0 0.0
        %971 = vmatprep.subr.mxu0 0.0
        %972 = vmatpush1.msra.mxu0 0.0
        %973 = vmatprep.subr.mxu0 0.0
        %974 = vmatpush1.msra.mxu0 0.0
        %975 = vmatprep.subr.mxu0 0.0
        %976 = vmatpush1.msra.mxu0 0.0
        %977 = vmatprep.subr.mxu0 0.0
        %978 = vmatpush1.msra.mxu0 0.0
        %979 = vmatprep.subr.mxu0 0.0
        %980 = vmatpush1.msra.mxu0 0.0
        %981 = vmatprep.subr.mxu0 0.0
        %982 = vmatpush1.msra.mxu0 0.0
        %983 = vmatprep.subr.mxu0 0.0
        %984 = vmatpush1.msra.mxu0 0.0
        %985 = vmatprep.subr.mxu0 0.0
        %986 = vmatpush1.msra.mxu0 0.0
        %987 = vmatprep.subr.mxu0 0.0
        %988 = vmatpush1.msra.mxu0 0.0
        %989 = vmatprep.mubr.f32.mxu0 0.0
        %990 = vmatmul.mubr.f32.gmra.mrb[0].mxu0 %v834
        %v991 = vpop.f32.mrb[0].mxu0
        %v992 = vadd.f32 %v608, %v991
        %v993 = vpop.f32.mrb[0].mxu0
        %v994 = vadd.f32 %v610, %v993
        %995 = vdwg.mxu0
        %996 = vmatprep.subr.mxu0 %v846
        %997 = vmatpush1.msra.mxu0 %v844
        %998 = vmatprep.subr.mxu0 0.0
        %999 = vmatpush1.msra.mxu0 0.0
        %1000 = vmatprep.subr.mxu0 0.0
        %1001 = vmatpush1.msra.mxu0 0.0
        %1002 = vmatprep.subr.mxu0 0.0
        %1003 = vmatpush1.msra.mxu0 0.0
        %1004 = vmatprep.subr.mxu0 0.0
        %1005 = vmatpush1.msra.mxu0 0.0
        %1006 = vmatprep.subr.mxu0 0.0
        %1007 = vmatpush1.msra.mxu0 0.0
        %1008 = vmatprep.subr.mxu0 0.0
        %1009 = vmatpush1.msra.mxu0 0.0
        %1010 = vmatprep.subr.mxu0 0.0
        %1011 = vmatpush1.msra.mxu0 0.0
        %1012 = vmatprep.subr.mxu0 0.0
        %1013 = vmatpush1.msra.mxu0 0.0
        %1014 = vmatprep.subr.mxu0 0.0
        %1015 = vmatpush1.msra.mxu0 0.0
        %1016 = vmatprep.subr.mxu0 0.0
        %1017 = vmatpush1.msra.mxu0 0.0
        %1018 = vmatprep.subr.mxu0 0.0
        %1019 = vmatpush1.msra.mxu0 0.0
        %1020 = vmatprep.subr.mxu0 0.0
        %1021 = vmatpush1.msra.mxu0 0.0
        %1022 = vmatprep.subr.mxu0 0.0
        %1023 = vmatpush1.msra.mxu0 0.0
        %1024 = vmatprep.subr.mxu0 0.0
        %1025 = vmatpush1.msra.mxu0 0.0
        %1026 = vmatprep.subr.mxu0 0.0
        %1027 = vmatpush1.msra.mxu0 0.0
        %1028 = vmatprep.subr.mxu0 0.0
        %1029 = vmatpush1.msra.mxu0 0.0
        %1030 = vmatprep.subr.mxu0 0.0
        %1031 = vmatpush1.msra.mxu0 0.0
        %1032 = vmatprep.subr.mxu0 0.0
        %1033 = vmatpush1.msra.mxu0 0.0
        %1034 = vmatprep.subr.mxu0 0.0
        %1035 = vmatpush1.msra.mxu0 0.0
        %1036 = vmatprep.subr.mxu0 0.0
        %1037 = vmatpush1.msra.mxu0 0.0
        %1038 = vmatprep.subr.mxu0 0.0
        %1039 = vmatpush1.msra.mxu0 0.0
        %1040 = vmatprep.subr.mxu0 0.0
        %1041 = vmatpush1.msra.mxu0 0.0
        %1042 = vmatprep.subr.mxu0 0.0
        %1043 = vmatpush1.msra.mxu0 0.0
        %1044 = vmatprep.subr.mxu0 0.0
        %1045 = vmatpush1.msra.mxu0 0.0
        %1046 = vmatprep.subr.mxu0 0.0
        %1047 = vmatpush1.msra.mxu0 0.0
        %1048 = vmatprep.subr.mxu0 0.0
        %1049 = vmatpush1.msra.mxu0 0.0
        %1050 = vmatprep.subr.mxu0 0.0
        %1051 = vmatpush1.msra.mxu0 0.0
        %1052 = vmatprep.subr.mxu0 0.0
        %1053 = vmatpush1.msra.mxu0 0.0
        %1054 = vmatprep.subr.mxu0 0.0
        %1055 = vmatpush1.msra.mxu0 0.0
        %1056 = vmatprep.subr.mxu0 0.0
        %1057 = vmatpush1.msra.mxu0 0.0
        %1058 = vmatprep.subr.mxu0 0.0
        %1059 = vmatpush1.msra.mxu0 0.0
        %1060 = vmatprep.mubr.f32.mxu0 0.0
        %1061 = vmatmul.mubr.f32.gmra.mrb[0].mxu0 %v834
        %v1062 = vpop.f32.mrb[0].mxu0
        %v1063 = vadd.f32 %v679, %v1062
        %v1064 = vpop.f32.mrb[0].mxu0
        %v1065 = vadd.f32 %v681, %v1064
        %1066 = vdwg.mxu0
        %1067 = vmatprep.subr.mxu0 %v850
        %1068 = vmatpush1.msra.mxu0 %v848
        %1069 = vmatprep.subr.mxu0 0.0
        %1070 = vmatpush1.msra.mxu0 0.0
        %1071 = vmatprep.subr.mxu0 0.0
        %1072 = vmatpush1.msra.mxu0 0.0
        %1073 = vmatprep.subr.mxu0 0.0
        %1074 = vmatpush1.msra.mxu0 0.0
        %1075 = vmatprep.subr.mxu0 0.0
        %1076 = vmatpush1.msra.mxu0 0.0
        %1077 = vmatprep.subr.mxu0 0.0
        %1078 = vmatpush1.msra.mxu0 0.0
        %1079 = vmatprep.subr.mxu0 0.0
        %1080 = vmatpush1.msra.mxu0 0.0
        %1081 = vmatprep.subr.mxu0 0.0
        %1082 = vmatpush1.msra.mxu0 0.0
        %1083 = vmatprep.subr.mxu0 0.0
        %1084 = vmatpush1.msra.mxu0 0.0
        %1085 = vmatprep.subr.mxu0 0.0
        %1086 = vmatpush1.msra.mxu0 0.0
        %1087 = vmatprep.subr.mxu0 0.0
        %1088 = vmatpush1.msra.mxu0 0.0
        %1089 = vmatprep.subr.mxu0 0.0
        %1090 = vmatpush1.msra.mxu0 0.0
        %1091 = vmatprep.subr.mxu0 0.0
        %1092 = vmatpush1.msra.mxu0 0.0
        %1093 = vmatprep.subr.mxu0 0.0
        %1094 = vmatpush1.msra.mxu0 0.0
        %1095 = vmatprep.subr.mxu0 0.0
        %1096 = vmatpush1.msra.mxu0 0.0
        %1097 = vmatprep.subr.mxu0 0.0
        %1098 = vmatpush1.msra.mxu0 0.0
        %1099 = vmatprep.subr.mxu0 0.0
        %1100 = vmatpush1.msra.mxu0 0.0
        %1101 = vmatprep.subr.mxu0 0.0
        %1102 = vmatpush1.msra.mxu0 0.0
        %1103 = vmatprep.subr.mxu0 0.0
        %1104 = vmatpush1.msra.mxu0 0.0
        %1105 = vmatprep.subr.mxu0 0.0
        %1106 = vmatpush1.msra.mxu0 0.0
        %1107 = vmatprep.subr.mxu0 0.0
        %1108 = vmatpush1.msra.mxu0 0.0
        %1109 = vmatprep.subr.mxu0 0.0
        %1110 = vmatpush1.msra.mxu0 0.0
        %1111 = vmatprep.subr.mxu0 0.0
        %1112 = vmatpush1.msra.mxu0 0.0
        %1113 = vmatprep.subr.mxu0 0.0
        %1114 = vmatpush1.msra.mxu0 0.0
        %1115 = vmatprep.subr.mxu0 0.0
        %1116 = vmatpush1.msra.mxu0 0.0
        %1117 = vmatprep.subr.mxu0 0.0
        %1118 = vmatpush1.msra.mxu0 0.0
        %1119 = vmatprep.subr.mxu0 0.0
        %1120 = vmatpush1.msra.mxu0 0.0
        %1121 = vmatprep.subr.mxu0 0.0
        %1122 = vmatpush1.msra.mxu0 0.0
        %1123 = vmatprep.subr.mxu0 0.0
        %1124 = vmatpush1.msra.mxu0 0.0
        %1125 = vmatprep.subr.mxu0 0.0
        %1126 = vmatpush1.msra.mxu0 0.0
        %1127 = vmatprep.subr.mxu0 0.0
        %1128 = vmatpush1.msra.mxu0 0.0
        %1129 = vmatprep.subr.mxu0 0.0
        %1130 = vmatpush1.msra.mxu0 0.0
        %1131 = vmatprep.mubr.f32.mxu0 0.0
        %1132 = vmatmul.mubr.f32.gmra.mrb[0].mxu0 %v834
        %v1133 = vpop.f32.mrb[0].mxu0
        %v1134 = vadd.f32 %v750, %v1133
        %v1135 = vpop.f32.mrb[0].mxu0
        %v1136 = vadd.f32 %v752, %v1135
        %1137 = vdwg.mxu0
        %1138 = vmatprep.subr.mxu0 0.0
        %1139 = vmatpush1.msra.mxu0 %v852
        %1140 = vmatprep.subr.mxu0 0.0
        %1141 = vmatpush1.msra.mxu0 0.0
        %1142 = vmatprep.subr.mxu0 0.0
        %1143 = vmatpush1.msra.mxu0 0.0
        %1144 = vmatprep.subr.mxu0 0.0
        %1145 = vmatpush1.msra.mxu0 0.0
        %1146 = vmatprep.subr.mxu0 0.0
        %1147 = vmatpush1.msra.mxu0 0.0
        %1148 = vmatprep.subr.mxu0 0.0
        %1149 = vmatpush1.msra.mxu0 0.0
        %1150 = vmatprep.subr.mxu0 0.0
        %1151 = vmatpush1.msra.mxu0 0.0
        %1152 = vmatprep.subr.mxu0 0.0
        %1153 = vmatpush1.msra.mxu0 0.0
        %1154 = vmatprep.subr.mxu0 0.0
        %1155 = vmatpush1.msra.mxu0 0.0
        %1156 = vmatprep.subr.mxu0 0.0
        %1157 = vmatpush1.msra.mxu0 0.0
        %1158 = vmatprep.subr.mxu0 0.0
        %1159 = vmatpush1.msra.mxu0 0.0
        %1160 = vmatprep.subr.mxu0 0.0
        %1161 = vmatpush1.msra.mxu0 0.0
        %1162 = vmatprep.subr.mxu0 0.0
        %1163 = vmatpush1.msra.mxu0 0.0
        %1164 = vmatprep.subr.mxu0 0.0
        %1165 = vmatpush1.msra.mxu0 0.0
        %1166 = vmatprep.subr.mxu0 0.0
        %1167 = vmatpush1.msra.mxu0 0.0
        %1168 = vmatprep.subr.mxu0 0.0
        %1169 = vmatpush1.msra.mxu0 0.0
        %1170 = vmatprep.subr.mxu0 0.0
        %1171 = vmatpush1.msra.mxu0 0.0
        %1172 = vmatprep.subr.mxu0 0.0
        %1173 = vmatpush1.msra.mxu0 0.0
        %1174 = vmatprep.subr.mxu0 0.0
        %1175 = vmatpush1.msra.mxu0 0.0
        %1176 = vmatprep.subr.mxu0 0.0
        %1177 = vmatpush1.msra.mxu0 0.0
        %1178 = vmatprep.subr.mxu0 0.0
        %1179 = vmatpush1.msra.mxu0 0.0
        %1180 = vmatprep.subr.mxu0 0.0
        %1181 = vmatpush1.msra.mxu0 0.0
        %1182 = vmatprep.subr.mxu0 0.0
        %1183 = vmatpush1.msra.mxu0 0.0
        %1184 = vmatprep.subr.mxu0 0.0
        %1185 = vmatpush1.msra.mxu0 0.0
        %1186 = vmatprep.subr.mxu0 0.0
        %1187 = vmatpush1.msra.mxu0 0.0
        %1188 = vmatprep.subr.mxu0 0.0
        %1189 = vmatpush1.msra.mxu0 0.0
        %1190 = vmatprep.subr.mxu0 0.0
        %1191 = vmatpush1.msra.mxu0 0.0
        %1192 = vmatprep.subr.mxu0 0.0
        %1193 = vmatpush1.msra.mxu0 0.0
        %1194 = vmatprep.subr.mxu0 0.0
        %1195 = vmatpush1.msra.mxu0 0.0
        %1196 = vmatprep.subr.mxu0 0.0
        %1197 = vmatpush1.msra.mxu0 0.0
        %1198 = vmatprep.subr.mxu0 0.0
        %1199 = vmatpush1.msra.mxu0 0.0
        %1200 = vmatprep.subr.mxu0 0.0
        %1201 = vmatpush1.msra.mxu0 0.0
        %1202 = vmatprep.mubr.f32.mxu0 0.0
        %1203 = vmatmul.mubr.f32.gmra.mrb[0].mxu0 %v834
        %v1204 = vpop.f32.mrb[0].mxu0
        %v1205 = vadd.f32 %v821, %v1204
        %v1206 = vpop.f32.mrb[0].mxu0
        %1207 = vdwg.mxu0
        %v1208 = vld [vmem:[%s4] sm:$0xf]
        %v1209 = vld [vmem:[%s5] sm:$0xf]
        %v1211 = vsel %vm447, %v1209, 0
        %1213 = vmatprep.subr.mxu0 %v454
        %1214 = vmatpush1.msra.mxu0 %v452
        %1215 = vmatprep.subr.mxu0 0.0
        %1216 = vmatpush1.msra.mxu0 0.0
        %1217 = vmatprep.subr.mxu0 0.0
        %1218 = vmatpush1.msra.mxu0 0.0
        %1219 = vmatprep.subr.mxu0 0.0
        %1220 = vmatpush1.msra.mxu0 0.0
        %1221 = vmatprep.subr.mxu0 0.0
        %1222 = vmatpush1.msra.mxu0 0.0
        %1223 = vmatprep.subr.mxu0 0.0
        %1224 = vmatpush1.msra.mxu0 0.0
        %1225 = vmatprep.subr.mxu0 0.0
        %1226 = vmatpush1.msra.mxu0 0.0
        %1227 = vmatprep.subr.mxu0 0.0
        %1228 = vmatpush1.msra.mxu0 0.0
        %1229 = vmatprep.subr.mxu0 0.0
        %1230 = vmatpush1.msra.mxu0 0.0
        %1231 = vmatprep.subr.mxu0 0.0
        %1232 = vmatpush1.msra.mxu0 0.0
        %1233 = vmatprep.subr.mxu0 0.0
        %1234 = vmatpush1.msra.mxu0 0.0
        %1235 = vmatprep.subr.mxu0 0.0
        %1236 = vmatpush1.msra.mxu0 0.0
        %1237 = vmatprep.subr.mxu0 0.0
        %1238 = vmatpush1.msra.mxu0 0.0
        %1239 = vmatprep.subr.mxu0 0.0
        %1240 = vmatpush1.msra.mxu0 0.0
        %1241 = vmatprep.subr.mxu0 0.0
        %1242 = vmatpush1.msra.mxu0 0.0
        %1243 = vmatprep.subr.mxu0 0.0
        %1244 = vmatpush1.msra.mxu0 0.0
        %1245 = vmatprep.subr.mxu0 0.0
        %1246 = vmatpush1.msra.mxu0 0.0
        %1247 = vmatprep.subr.mxu0 0.0
        %1248 = vmatpush1.msra.mxu0 0.0
        %1249 = vmatprep.subr.mxu0 0.0
        %1250 = vmatpush1.msra.mxu0 0.0
        %1251 = vmatprep.subr.mxu0 0.0
        %1252 = vmatpush1.msra.mxu0 0.0
        %1253 = vmatprep.subr.mxu0 0.0
        %1254 = vmatpush1.msra.mxu0 0.0
        %1255 = vmatprep.subr.mxu0 0.0
        %1256 = vmatpush1.msra.mxu0 0.0
        %1257 = vmatprep.subr.mxu0 0.0
        %1258 = vmatpush1.msra.mxu0 0.0
        %1259 = vmatprep.subr.mxu0 0.0
        %1260 = vmatpush1.msra.mxu0 0.0
        %1261 = vmatprep.subr.mxu0 0.0
        %1262 = vmatpush1.msra.mxu0 0.0
        %1263 = vmatprep.subr.mxu0 0.0
        %1264 = vmatpush1.msra.mxu0 0.0
        %1265 = vmatprep.subr.mxu0 0.0
        %1266 = vmatpush1.msra.mxu0 0.0
        %1267 = vmatprep.subr.mxu0 0.0
        %1268 = vmatpush1.msra.mxu0 0.0
        %1269 = vmatprep.subr.mxu0 0.0
        %1270 = vmatpush1.msra.mxu0 0.0
        %1271 = vmatprep.subr.mxu0 0.0
        %1272 = vmatpush1.msra.mxu0 0.0
        %1273 = vmatprep.subr.mxu0 0.0
        %1274 = vmatpush1.msra.mxu0 0.0
        %1275 = vmatprep.subr.mxu0 0.0
        %1276 = vmatpush1.msra.mxu0 0.0
        %1277 = vmatprep.mubr.f32.mxu0 0.0
        %1278 = vmatmul.mubr.f32.gmra.mrb[0].mxu0 %v1211
        %v1279 = vpop.f32.mrb[0].mxu0
        %v1280 = vadd.f32 0.0, %v1279
        %v1281 = vpop.f32.mrb[0].mxu0
        %v1282 = vadd.f32 0.0, %v1281
        %1283 = vdwg.mxu0
        %1284 = vmatprep.subr.mxu0 %v458
        %1285 = vmatpush1.msra.mxu0 %v456
        %1286 = vmatprep.subr.mxu0 0.0
        %1287 = vmatpush1.msra.mxu0 0.0
        %1288 = vmatprep.subr.mxu0 0.0
        %1289 = vmatpush1.msra.mxu0 0.0
        %1290 = vmatprep.subr.mxu0 0.0
        %1291 = vmatpush1.msra.mxu0 0.0
        %1292 = vmatprep.subr.mxu0 0.0
        %1293 = vmatpush1.msra.mxu0 0.0
        %1294 = vmatprep.subr.mxu0 0.0
        %1295 = vmatpush1.msra.mxu0 0.0
        %1296 = vmatprep.subr.mxu0 0.0
        %1297 = vmatpush1.msra.mxu0 0.0
        %1298 = vmatprep.subr.mxu0 0.0
        %1299 = vmatpush1.msra.mxu0 0.0
        %1300 = vmatprep.subr.mxu0 0.0
        %1301 = vmatpush1.msra.mxu0 0.0
        %1302 = vmatprep.subr.mxu0 0.0
        %1303 = vmatpush1.msra.mxu0 0.0
        %1304 = vmatprep.subr.mxu0 0.0
        %1305 = vmatpush1.msra.mxu0 0.0
        %1306 = vmatprep.subr.mxu0 0.0
        %1307 = vmatpush1.msra.mxu0 0.0
        %1308 = vmatprep.subr.mxu0 0.0
        %1309 = vmatpush1.msra.mxu0 0.0
        %1310 = vmatprep.subr.mxu0 0.0
        %1311 = vmatpush1.msra.mxu0 0.0
        %1312 = vmatprep.subr.mxu0 0.0
        %1313 = vmatpush1.msra.mxu0 0.0
        %1314 = vmatprep.subr.mxu0 0.0
        %1315 = vmatpush1.msra.mxu0 0.0
        %1316 = vmatprep.subr.mxu0 0.0
        %1317 = vmatpush1.msra.mxu0 0.0
        %1318 = vmatprep.subr.mxu0 0.0
        %1319 = vmatpush1.msra.mxu0 0.0
        %1320 = vmatprep.subr.mxu0 0.0
        %1321 = vmatpush1.msra.mxu0 0.0
        %1322 = vmatprep.subr.mxu0 0.0
        %1323 = vmatpush1.msra.mxu0 0.0
        %1324 = vmatprep.subr.mxu0 0.0
        %1325 = vmatpush1.msra.mxu0 0.0
        %1326 = vmatprep.subr.mxu0 0.0
        %1327 = vmatpush1.msra.mxu0 0.0
        %1328 = vmatprep.subr.mxu0 0.0
        %1329 = vmatpush1.msra.mxu0 0.0
        %1330 = vmatprep.subr.mxu0 0.0
        %1331 = vmatpush1.msra.mxu0 0.0
        %1332 = vmatprep.subr.mxu0 0.0
        %1333 = vmatpush1.msra.mxu0 0.0
        %1334 = vmatprep.subr.mxu0 0.0
        %1335 = vmatpush1.msra.mxu0 0.0
        %1336 = vmatprep.subr.mxu0 0.0
        %1337 = vmatpush1.msra.mxu0 0.0
        %1338 = vmatprep.subr.mxu0 0.0
        %1339 = vmatpush1.msra.mxu0 0.0
        %1340 = vmatprep.subr.mxu0 0.0
        %1341 = vmatpush1.msra.mxu0 0.0
        %1342 = vmatprep.subr.mxu0 0.0
        %1343 = vmatpush1.msra.mxu0 0.0
        %1344 = vmatprep.subr.mxu0 0.0
        %1345 = vmatpush1.msra.mxu0 0.0
        %1346 = vmatprep.subr.mxu0 0.0
        %1347 = vmatpush1.msra.mxu0 0.0
        %1348 = vmatprep.mubr.f32.mxu0 0.0
        %1349 = vmatmul.mubr.f32.gmra.mrb[0].mxu0 %v1211
        %v1350 = vpop.f32.mrb[0].mxu0
        %v1351 = vadd.f32 0.0, %v1350
        %v1352 = vpop.f32.mrb[0].mxu0
        %v1353 = vadd.f32 0.0, %v1352
        %1354 = vdwg.mxu0
        %1355 = vmatprep.subr.mxu0 %v462
        %1356 = vmatpush1.msra.mxu0 %v460
        %1357 = vmatprep.subr.mxu0 0.0
        %1358 = vmatpush1.msra.mxu0 0.0
        %1359 = vmatprep.subr.mxu0 0.0
        %1360 = vmatpush1.msra.mxu0 0.0
        %1361 = vmatprep.subr.mxu0 0.0
        %1362 = vmatpush1.msra.mxu0 0.0
        %1363 = vmatprep.subr.mxu0 0.0
        %1364 = vmatpush1.msra.mxu0 0.0
        %1365 = vmatprep.subr.mxu0 0.0
        %1366 = vmatpush1.msra.mxu0 0.0
        %1367 = vmatprep.subr.mxu0 0.0
        %1368 = vmatpush1.msra.mxu0 0.0
        %1369 = vmatprep.subr.mxu0 0.0
        %1370 = vmatpush1.msra.mxu0 0.0
        %1371 = vmatprep.subr.mxu0 0.0
        %1372 = vmatpush1.msra.mxu0 0.0
        %1373 = vmatprep.subr.mxu0 0.0
        %1374 = vmatpush1.msra.mxu0 0.0
        %1375 = vmatprep.subr.mxu0 0.0
        %1376 = vmatpush1.msra.mxu0 0.0
        %1377 = vmatprep.subr.mxu0 0.0
        %1378 = vmatpush1.msra.mxu0 0.0
        %1379 = vmatprep.subr.mxu0 0.0
        %1380 = vmatpush1.msra.mxu0 0.0
        %1381 = vmatprep.subr.mxu0 0.0
        %1382 = vmatpush1.msra.mxu0 0.0
        %1383 = vmatprep.subr.mxu0 0.0
        %1384 = vmatpush1.msra.mxu0 0.0
        %1385 = vmatprep.subr.mxu0 0.0
        %1386 = vmatpush1.msra.mxu0 0.0
        %1387 = vmatprep.subr.mxu0 0.0
        %1388 = vmatpush1.msra.mxu0 0.0
        %1389 = vmatprep.subr.mxu0 0.0
        %1390 = vmatpush1.msra.mxu0 0.0
        %1391 = vmatprep.subr.mxu0 0.0
        %1392 = vmatpush1.msra.mxu0 0.0
        %1393 = vmatprep.subr.mxu0 0.0
        %1394 = vmatpush1.msra.mxu0 0.0
        %1395 = vmatprep.subr.mxu0 0.0
        %1396 = vmatpush1.msra.mxu0 0.0
        %1397 = vmatprep.subr.mxu0 0.0
        %1398 = vmatpush1.msra.mxu0 0.0
        %1399 = vmatprep.subr.mxu0 0.0
        %1400 = vmatpush1.msra.mxu0 0.0
        %1401 = vmatprep.subr.mxu0 0.0
        %1402 = vmatpush1.msra.mxu0 0.0
        %1403 = vmatprep.subr.mxu0 0.0
        %1404 = vmatpush1.msra.mxu0 0.0
        %1405 = vmatprep.subr.mxu0 0.0
        %1406 = vmatpush1.msra.mxu0 0.0
        %1407 = vmatprep.subr.mxu0 0.0
        %1408 = vmatpush1.msra.mxu0 0.0
        %1409 = vmatprep.subr.mxu0 0.0
        %1410 = vmatpush1.msra.mxu0 0.0
        %1411 = vmatprep.subr.mxu0 0.0
        %1412 = vmatpush1.msra.mxu0 0.0
        %1413 = vmatprep.subr.mxu0 0.0
        %1414 = vmatpush1.msra.mxu0 0.0
        %1415 = vmatprep.subr.mxu0 0.0
        %1416 = vmatpush1.msra.mxu0 0.0
        %1417 = vmatprep.subr.mxu0 0.0
        %1418 = vmatpush1.msra.mxu0 0.0
        %1419 = vmatprep.mubr.f32.mxu0 0.0
        %1420 = vmatmul.mubr.f32.gmra.mrb[0].mxu0 %v1211
        %v1421 = vpop.f32.mrb[0].mxu0
        %v1422 = vadd.f32 0.0, %v1421
        %v1423 = vpop.f32.mrb[0].mxu0
        %v1424 = vadd.f32 0.0, %v1423
        %1425 = vdwg.mxu0
        %1426 = vmatprep.subr.mxu0 %v466
        %1427 = vmatpush1.msra.mxu0 %v464
        %1428 = vmatprep.subr.mxu0 0.0
        %1429 = vmatpush1.msra.mxu0 0.0
        %1430 = vmatprep.subr.mxu0 0.0
        %1431 = vmatpush1.msra.mxu0 0.0
        %1432 = vmatprep.subr.mxu0 0.0
        %1433 = vmatpush1.msra.mxu0 0.0
        %1434 = vmatprep.subr.mxu0 0.0
        %1435 = vmatpush1.msra.mxu0 0.0
        %1436 = vmatprep.subr.mxu0 0.0
        %1437 = vmatpush1.msra.mxu0 0.0
        %1438 = vmatprep.subr.mxu0 0.0
        %1439 = vmatpush1.msra.mxu0 0.0
        %1440 = vmatprep.subr.mxu0 0.0
        %1441 = vmatpush1.msra.mxu0 0.0
        %1442 = vmatprep.subr.mxu0 0.0
        %1443 = vmatpush1.msra.mxu0 0.0
        %1444 = vmatprep.subr.mxu0 0.0
        %1445 = vmatpush1.msra.mxu0 0.0
        %1446 = vmatprep.subr.mxu0 0.0
        %1447 = vmatpush1.msra.mxu0 0.0
        %1448 = vmatprep.subr.mxu0 0.0
        %1449 = vmatpush1.msra.mxu0 0.0
        %1450 = vmatprep.subr.mxu0 0.0
        %1451 = vmatpush1.msra.mxu0 0.0
        %1452 = vmatprep.subr.mxu0 0.0
        %1453 = vmatpush1.msra.mxu0 0.0
        %1454 = vmatprep.subr.mxu0 0.0
        %1455 = vmatpush1.msra.mxu0 0.0
        %1456 = vmatprep.subr.mxu0 0.0
        %1457 = vmatpush1.msra.mxu0 0.0
        %1458 = vmatprep.subr.mxu0 0.0
        %1459 = vmatpush1.msra.mxu0 0.0
        %1460 = vmatprep.subr.mxu0 0.0
        %1461 = vmatpush1.msra.mxu0 0.0
        %1462 = vmatprep.subr.mxu0 0.0
        %1463 = vmatpush1.msra.mxu0 0.0
        %1464 = vmatprep.subr.mxu0 0.0
        %1465 = vmatpush1.msra.mxu0 0.0
        %1466 = vmatprep.subr.mxu0 0.0
        %1467 = vmatpush1.msra.mxu0 0.0
        %1468 = vmatprep.subr.mxu0 0.0
        %1469 = vmatpush1.msra.mxu0 0.0
        %1470 = vmatprep.subr.mxu0 0.0
        %1471 = vmatpush1.msra.mxu0 0.0
        %1472 = vmatprep.subr.mxu0 0.0
        %1473 = vmatpush1.msra.mxu0 0.0
        %1474 = vmatprep.subr.mxu0 0.0
        %1475 = vmatpush1.msra.mxu0 0.0
        %1476 = vmatprep.subr.mxu0 0.0
        %1477 = vmatpush1.msra.mxu0 0.0
        %1478 = vmatprep.subr.mxu0 0.0
        %1479 = vmatpush1.msra.mxu0 0.0
        %1480 = vmatprep.subr.mxu0 0.0
        %1481 = vmatpush1.msra.mxu0 0.0
        %1482 = vmatprep.subr.mxu0 0.0
        %1483 = vmatpush1.msra.mxu0 0.0
        %1484 = vmatprep.subr.mxu0 0.0
        %1485 = vmatpush1.msra.mxu0 0.0
        %1486 = vmatprep.subr.mxu0 0.0
        %1487 = vmatpush1.msra.mxu0 0.0
        %1488 = vmatprep.subr.mxu0 0.0
        %1489 = vmatpush1.msra.mxu0 0.0
        %1490 = vmatprep.mubr.f32.mxu0 0.0
        %1491 = vmatmul.mubr.f32.gmra.mrb[0].mxu0 %v1211
        %v1492 = vpop.f32.mrb[0].mxu0
        %v1493 = vadd.f32 0.0, %v1492
        %v1494 = vpop.f32.mrb[0].mxu0
        %v1495 = vadd.f32 0.0, %v1494
        %1496 = vdwg.mxu0
        %1497 = vmatprep.subr.mxu0 0.0
        %1498 = vmatpush1.msra.mxu0 %v468
        %1499 = vmatprep.subr.mxu0 0.0
        %1500 = vmatpush1.msra.mxu0 0.0
        %1501 = vmatprep.subr.mxu0 0.0
        %1502 = vmatpush1.msra.mxu0 0.0
        %1503 = vmatprep.subr.mxu0 0.0
        %1504 = vmatpush1.msra.mxu0 0.0
        %1505 = vmatprep.subr.mxu0 0.0
        %1506 = vmatpush1.msra.mxu0 0.0
        %1507 = vmatprep.subr.mxu0 0.0
        %1508 = vmatpush1.msra.mxu0 0.0
        %1509 = vmatprep.subr.mxu0 0.0
        %1510 = vmatpush1.msra.mxu0 0.0
        %1511 = vmatprep.subr.mxu0 0.0
        %1512 = vmatpush1.msra.mxu0 0.0
        %1513 = vmatprep.subr.mxu0 0.0
        %1514 = vmatpush1.msra.mxu0 0.0
        %1515 = vmatprep.subr.mxu0 0.0
        %1516 = vmatpush1.msra.mxu0 0.0
        %1517 = vmatprep.subr.mxu0 0.0
        %1518 = vmatpush1.msra.mxu0 0.0
        %1519 = vmatprep.subr.mxu0 0.0
        %1520 = vmatpush1.msra.mxu0 0.0
        %1521 = vmatprep.subr.mxu0 0.0
        %1522 = vmatpush1.msra.mxu0 0.0
        %1523 = vmatprep.subr.mxu0 0.0
        %1524 = vmatpush1.msra.mxu0 0.0
        %1525 = vmatprep.subr.mxu0 0.0
        %1526 = vmatpush1.msra.mxu0 0.0
        %1527 = vmatprep.subr.mxu0 0.0
        %1528 = vmatpush1.msra.mxu0 0.0
        %1529 = vmatprep.subr.mxu0 0.0
        %1530 = vmatpush1.msra.mxu0 0.0
        %1531 = vmatprep.subr.mxu0 0.0
        %1532 = vmatpush1.msra.mxu0 0.0
        %1533 = vmatprep.subr.mxu0 0.0
        %1534 = vmatpush1.msra.mxu0 0.0
        %1535 = vmatprep.subr.mxu0 0.0
        %1536 = vmatpush1.msra.mxu0 0.0
        %1537 = vmatprep.subr.mxu0 0.0
        %1538 = vmatpush1.msra.mxu0 0.0
        %1539 = vmatprep.subr.mxu0 0.0
        %1540 = vmatpush1.msra.mxu0 0.0
        %1541 = vmatprep.subr.mxu0 0.0
        %1542 = vmatpush1.msra.mxu0 0.0
        %1543 = vmatprep.subr.mxu0 0.0
        %1544 = vmatpush1.msra.mxu0 0.0
        %1545 = vmatprep.subr.mxu0 0.0
        %1546 = vmatpush1.msra.mxu0 0.0
        %1547 = vmatprep.subr.mxu0 0.0
        %1548 = vmatpush1.msra.mxu0 0.0
        %1549 = vmatprep.subr.mxu0 0.0
        %1550 = vmatpush1.msra.mxu0 0.0
        %1551 = vmatprep.subr.mxu0 0.0
        %1552 = vmatpush1.msra.mxu0 0.0
        %1553 = vmatprep.subr.mxu0 0.0
        %1554 = vmatpush1.msra.mxu0 0.0
        %1555 = vmatprep.subr.mxu0 0.0
        %1556 = vmatpush1.msra.mxu0 0.0
        %1557 = vmatprep.subr.mxu0 0.0
        %1558 = vmatpush1.msra.mxu0 0.0
        %1559 = vmatprep.subr.mxu0 0.0
        %1560 = vmatpush1.msra.mxu0 0.0
        %1561 = vmatprep.mubr.f32.mxu0 0.0
        %1562 = vmatmul.mubr.f32.gmra.mrb[0].mxu0 %v1211
        %v1563 = vpop.f32.mrb[0].mxu0
        %v1564 = vadd.f32 0.0, %v1563
        %v1565 = vpop.f32.mrb[0].mxu0
        %1566 = vdwg.mxu0
        %v1568 = vsel %vm447, %v1208, 0
        %1570 = vmatprep.subr.mxu0 %v838
        %1571 = vmatpush1.msra.mxu0 %v836
        %1572 = vmatprep.subr.mxu0 0.0
        %1573 = vmatpush1.msra.mxu0 0.0
        %1574 = vmatprep.subr.mxu0 0.0
        %1575 = vmatpush1.msra.mxu0 0.0
        %1576 = vmatprep.subr.mxu0 0.0
        %1577 = vmatpush1.msra.mxu0 0.0
        %1578 = vmatprep.subr.mxu0 0.0
        %1579 = vmatpush1.msra.mxu0 0.0
        %1580 = vmatprep.subr.mxu0 0.0
        %1581 = vmatpush1.msra.mxu0 0.0
        %1582 = vmatprep.subr.mxu0 0.0
        %1583 = vmatpush1.msra.mxu0 0.0
        %1584 = vmatprep.subr.mxu0 0.0
        %1585 = vmatpush1.msra.mxu0 0.0
        %1586 = vmatprep.subr.mxu0 0.0
        %1587 = vmatpush1.msra.mxu0 0.0
        %1588 = vmatprep.subr.mxu0 0.0
        %1589 = vmatpush1.msra.mxu0 0.0
        %1590 = vmatprep.subr.mxu0 0.0
        %1591 = vmatpush1.msra.mxu0 0.0
        %1592 = vmatprep.subr.mxu0 0.0
        %1593 = vmatpush1.msra.mxu0 0.0
        %1594 = vmatprep.subr.mxu0 0.0
        %1595 = vmatpush1.msra.mxu0 0.0
        %1596 = vmatprep.subr.mxu0 0.0
        %1597 = vmatpush1.msra.mxu0 0.0
        %1598 = vmatprep.subr.mxu0 0.0
        %1599 = vmatpush1.msra.mxu0 0.0
        %1600 = vmatprep.subr.mxu0 0.0
        %1601 = vmatpush1.msra.mxu0 0.0
        %1602 = vmatprep.subr.mxu0 0.0
        %1603 = vmatpush1.msra.mxu0 0.0
        %1604 = vmatprep.subr.mxu0 0.0
        %1605 = vmatpush1.msra.mxu0 0.0
        %1606 = vmatprep.subr.mxu0 0.0
        %1607 = vmatpush1.msra.mxu0 0.0
        %1608 = vmatprep.subr.mxu0 0.0
        %1609 = vmatpush1.msra.mxu0 0.0
        %1610 = vmatprep.subr.mxu0 0.0
        %1611 = vmatpush1.msra.mxu0 0.0
        %1612 = vmatprep.subr.mxu0 0.0
        %1613 = vmatpush1.msra.mxu0 0.0
        %1614 = vmatprep.subr.mxu0 0.0
        %1615 = vmatpush1.msra.mxu0 0.0
        %1616 = vmatprep.subr.mxu0 0.0
        %1617 = vmatpush1.msra.mxu0 0.0
        %1618 = vmatprep.subr.mxu0 0.0
        %1619 = vmatpush1.msra.mxu0 0.0
        %1620 = vmatprep.subr.mxu0 0.0
        %1621 = vmatpush1.msra.mxu0 0.0
        %1622 = vmatprep.subr.mxu0 0.0
        %1623 = vmatpush1.msra.mxu0 0.0
        %1624 = vmatprep.subr.mxu0 0.0
        %1625 = vmatpush1.msra.mxu0 0.0
        %1626 = vmatprep.subr.mxu0 0.0
        %1627 = vmatpush1.msra.mxu0 0.0
        %1628 = vmatprep.subr.mxu0 0.0
        %1629 = vmatpush1.msra.mxu0 0.0
        %1630 = vmatprep.subr.mxu0 0.0
        %1631 = vmatpush1.msra.mxu0 0.0
        %1632 = vmatprep.subr.mxu0 0.0
        %1633 = vmatpush1.msra.mxu0 0.0
        %1634 = vmatprep.mubr.f32.mxu0 0.0
        %1635 = vmatmul.mubr.f32.gmra.mrb[0].mxu0 %v1568
        %v1636 = vpop.f32.mrb[0].mxu0
        %v1637 = vadd.f32 %v1280, %v1636
        %v1638 = vpop.f32.mrb[0].mxu0
        %v1639 = vadd.f32 %v1282, %v1638
        %1640 = vdwg.mxu0
        %1641 = vmatprep.subr.mxu0 %v842
        %1642 = vmatpush1.msra.mxu0 %v840
        %1643 = vmatprep.subr.mxu0 0.0
        %1644 = vmatpush1.msra.mxu0 0.0
        %1645 = vmatprep.subr.mxu0 0.0
        %1646 = vmatpush1.msra.mxu0 0.0
        %1647 = vmatprep.subr.mxu0 0.0
        %1648 = vmatpush1.msra.mxu0 0.0
        %1649 = vmatprep.subr.mxu0 0.0
        %1650 = vmatpush1.msra.mxu0 0.0
        %1651 = vmatprep.subr.mxu0 0.0
        %1652 = vmatpush1.msra.mxu0 0.0
        %1653 = vmatprep.subr.mxu0 0.0
        %1654 = vmatpush1.msra.mxu0 0.0
        %1655 = vmatprep.subr.mxu0 0.0
        %1656 = vmatpush1.msra.mxu0 0.0
        %1657 = vmatprep.subr.mxu0 0.0
        %1658 = vmatpush1.msra.mxu0 0.0
        %1659 = vmatprep.subr.mxu0 0.0
        %1660 = vmatpush1.msra.mxu0 0.0
        %1661 = vmatprep.subr.mxu0 0.0
        %1662 = vmatpush1.msra.mxu0 0.0
        %1663 = vmatprep.subr.mxu0 0.0
        %1664 = vmatpush1.msra.mxu0 0.0
        %1665 = vmatprep.subr.mxu0 0.0
        %1666 = vmatpush1.msra.mxu0 0.0
        %1667 = vmatprep.subr.mxu0 0.0
        %1668 = vmatpush1.msra.mxu0 0.0
        %1669 = vmatprep.subr.mxu0 0.0
        %1670 = vmatpush1.msra.mxu0 0.0
        %1671 = vmatprep.subr.mxu0 0.0
        %1672 = vmatpush1.msra.mxu0 0.0
        %1673 = vmatprep.subr.mxu0 0.0
        %1674 = vmatpush1.msra.mxu0 0.0
        %1675 = vmatprep.subr.mxu0 0.0
        %1676 = vmatpush1.msra.mxu0 0.0
        %1677 = vmatprep.subr.mxu0 0.0
        %1678 = vmatpush1.msra.mxu0 0.0
        %1679 = vmatprep.subr.mxu0 0.0
        %1680 = vmatpush1.msra.mxu0 0.0
        %1681 = vmatprep.subr.mxu0 0.0
        %1682 = vmatpush1.msra.mxu0 0.0
        %1683 = vmatprep.subr.mxu0 0.0
        %1684 = vmatpush1.msra.mxu0 0.0
        %1685 = vmatprep.subr.mxu0 0.0
        %1686 = vmatpush1.msra.mxu0 0.0
        %1687 = vmatprep.subr.mxu0 0.0
        %1688 = vmatpush1.msra.mxu0 0.0
        %1689 = vmatprep.subr.mxu0 0.0
        %1690 = vmatpush1.msra.mxu0 0.0
        %1691 = vmatprep.subr.mxu0 0.0
        %1692 = vmatpush1.msra.mxu0 0.0
        %1693 = vmatprep.subr.mxu0 0.0
        %1694 = vmatpush1.msra.mxu0 0.0
        %1695 = vmatprep.subr.mxu0 0.0
        %1696 = vmatpush1.msra.mxu0 0.0
        %1697 = vmatprep.subr.mxu0 0.0
        %1698 = vmatpush1.msra.mxu0 0.0
        %1699 = vmatprep.subr.mxu0 0.0
        %1700 = vmatpush1.msra.mxu0 0.0
        %1701 = vmatprep.subr.mxu0 0.0
        %1702 = vmatpush1.msra.mxu0 0.0
        %1703 = vmatprep.subr.mxu0 0.0
        %1704 = vmatpush1.msra.mxu0 0.0
        %1705 = vmatprep.mubr.f32.mxu0 0.0
        %1706 = vmatmul.mubr.f32.gmra.mrb[0].mxu0 %v1568
        %v1707 = vpop.f32.mrb[0].mxu0
        %v1708 = vadd.f32 %v1351, %v1707
        %v1709 = vpop.f32.mrb[0].mxu0
        %v1710 = vadd.f32 %v1353, %v1709
        %1711 = vdwg.mxu0
        %1712 = vmatprep.subr.mxu0 %v846
        %1713 = vmatpush1.msra.mxu0 %v844
        %1714 = vmatprep.subr.mxu0 0.0
        %1715 = vmatpush1.msra.mxu0 0.0
        %1716 = vmatprep.subr.mxu0 0.0
        %1717 = vmatpush1.msra.mxu0 0.0
        %1718 = vmatprep.subr.mxu0 0.0
        %1719 = vmatpush1.msra.mxu0 0.0
        %1720 = vmatprep.subr.mxu0 0.0
        %1721 = vmatpush1.msra.mxu0 0.0
        %1722 = vmatprep.subr.mxu0 0.0
        %1723 = vmatpush1.msra.mxu0 0.0
        %1724 = vmatprep.subr.mxu0 0.0
        %1725 = vmatpush1.msra.mxu0 0.0
        %1726 = vmatprep.subr.mxu0 0.0
        %1727 = vmatpush1.msra.mxu0 0.0
        %1728 = vmatprep.subr.mxu0 0.0
        %1729 = vmatpush1.msra.mxu0 0.0
        %1730 = vmatprep.subr.mxu0 0.0
        %1731 = vmatpush1.msra.mxu0 0.0
        %1732 = vmatprep.subr.mxu0 0.0
        %1733 = vmatpush1.msra.mxu0 0.0
        %1734 = vmatprep.subr.mxu0 0.0
        %1735 = vmatpush1.msra.mxu0 0.0
        %1736 = vmatprep.subr.mxu0 0.0
        %1737 = vmatpush1.msra.mxu0 0.0
        %1738 = vmatprep.subr.mxu0 0.0
        %1739 = vmatpush1.msra.mxu0 0.0
        %1740 = vmatprep.subr.mxu0 0.0
        %1741 = vmatpush1.msra.mxu0 0.0
        %1742 = vmatprep.subr.mxu0 0.0
        %1743 = vmatpush1.msra.mxu0 0.0
        %1744 = vmatprep.subr.mxu0 0.0
        %1745 = vmatpush1.msra.mxu0 0.0
        %1746 = vmatprep.subr.mxu0 0.0
        %1747 = vmatpush1.msra.mxu0 0.0
        %1748 = vmatprep.subr.mxu0 0.0
        %1749 = vmatpush1.msra.mxu0 0.0
        %1750 = vmatprep.subr.mxu0 0.0
        %1751 = vmatpush1.msra.mxu0 0.0
        %1752 = vmatprep.subr.mxu0 0.0
        %1753 = vmatpush1.msra.mxu0 0.0
        %1754 = vmatprep.subr.mxu0 0.0
        %1755 = vmatpush1.msra.mxu0 0.0
        %1756 = vmatprep.subr.mxu0 0.0
        %1757 = vmatpush1.msra.mxu0 0.0
        %1758 = vmatprep.subr.mxu0 0.0
        %1759 = vmatpush1.msra.mxu0 0.0
        %1760 = vmatprep.subr.mxu0 0.0
        %1761 = vmatpush1.msra.mxu0 0.0
        %1762 = vmatprep.subr.mxu0 0.0
        %1763 = vmatpush1.msra.mxu0 0.0
        %1764 = vmatprep.subr.mxu0 0.0
        %1765 = vmatpush1.msra.mxu0 0.0
        %1766 = vmatprep.subr.mxu0 0.0
        %1767 = vmatpush1.msra.mxu0 0.0
        %1768 = vmatprep.subr.mxu0 0.0
        %1769 = vmatpush1.msra.mxu0 0.0
        %1770 = vmatprep.subr.mxu0 0.0
        %1771 = vmatpush1.msra.mxu0 0.0
        %1772 = vmatprep.subr.mxu0 0.0
        %1773 = vmatpush1.msra.mxu0 0.0
        %1774 = vmatprep.subr.mxu0 0.0
        %1775 = vmatpush1.msra.mxu0 0.0
        %1776 = vmatprep.mubr.f32.mxu0 0.0
        %1777 = vmatmul.mubr.f32.gmra.mrb[0].mxu0 %v1568
        %v1778 = vpop.f32.mrb[0].mxu0
        %v1779 = vadd.f32 %v1422, %v1778
        %v1780 = vpop.f32.mrb[0].mxu0
        %v1781 = vadd.f32 %v1424, %v1780
        %1782 = vdwg.mxu0
        %1783 = vmatprep.subr.mxu0 %v850
        %1784 = vmatpush1.msra.mxu0 %v848
        %1785 = vmatprep.subr.mxu0 0.0
        %1786 = vmatpush1.msra.mxu0 0.0
        %1787 = vmatprep.subr.mxu0 0.0
        %1788 = vmatpush1.msra.mxu0 0.0
        %1789 = vmatprep.subr.mxu0 0.0
        %1790 = vmatpush1.msra.mxu0 0.0
        %1791 = vmatprep.subr.mxu0 0.0
        %1792 = vmatpush1.msra.mxu0 0.0
        %1793 = vmatprep.subr.mxu0 0.0
        %1794 = vmatpush1.msra.mxu0 0.0
        %1795 = vmatprep.subr.mxu0 0.0
        %1796 = vmatpush1.msra.mxu0 0.0
        %1797 = vmatprep.subr.mxu0 0.0
        %1798 = vmatpush1.msra.mxu0 0.0
        %1799 = vmatprep.subr.mxu0 0.0
        %1800 = vmatpush1.msra.mxu0 0.0
        %1801 = vmatprep.subr.mxu0 0.0
        %1802 = vmatpush1.msra.mxu0 0.0
        %1803 = vmatprep.subr.mxu0 0.0
        %1804 = vmatpush1.msra.mxu0 0.0
        %1805 = vmatprep.subr.mxu0 0.0
        %1806 = vmatpush1.msra.mxu0 0.0
        %1807 = vmatprep.subr.mxu0 0.0
        %1808 = vmatpush1.msra.mxu0 0.0
        %1809 = vmatprep.subr.mxu0 0.0
        %1810 = vmatpush1.msra.mxu0 0.0
        %1811 = vmatprep.subr.mxu0 0.0
        %1812 = vmatpush1.msra.mxu0 0.0
        %1813 = vmatprep.subr.mxu0 0.0
        %1814 = vmatpush1.msra.mxu0 0.0
        %1815 = vmatprep.subr.mxu0 0.0
        %1816 = vmatpush1.msra.mxu0 0.0
        %1817 = vmatprep.subr.mxu0 0.0
        %1818 = vmatpush1.msra.mxu0 0.0
        %1819 = vmatprep.subr.mxu0 0.0
        %1820 = vmatpush1.msra.mxu0 0.0
        %1821 = vmatprep.subr.mxu0 0.0
        %1822 = vmatpush1.msra.mxu0 0.0
        %1823 = vmatprep.subr.mxu0 0.0
        %1824 = vmatpush1.msra.mxu0 0.0
        %1825 = vmatprep.subr.mxu0 0.0
        %1826 = vmatpush1.msra.mxu0 0.0
        %1827 = vmatprep.subr.mxu0 0.0
        %1828 = vmatpush1.msra.mxu0 0.0
        %1829 = vmatprep.subr.mxu0 0.0
        %1830 = vmatpush1.msra.mxu0 0.0
        %1831 = vmatprep.subr.mxu0 0.0
        %1832 = vmatpush1.msra.mxu0 0.0
        %1833 = vmatprep.subr.mxu0 0.0
        %1834 = vmatpush1.msra.mxu0 0.0
        %1835 = vmatprep.subr.mxu0 0.0
        %1836 = vmatpush1.msra.mxu0 0.0
        %1837 = vmatprep.subr.mxu0 0.0
        %1838 = vmatpush1.msra.mxu0 0.0
        %1839 = vmatprep.subr.mxu0 0.0
        %1840 = vmatpush1.msra.mxu0 0.0
        %1841 = vmatprep.subr.mxu0 0.0
        %1842 = vmatpush1.msra.mxu0 0.0
        %1843 = vmatprep.subr.mxu0 0.0
        %1844 = vmatpush1.msra.mxu0 0.0
        %1845 = vmatprep.subr.mxu0 0.0
        %1846 = vmatpush1.msra.mxu0 0.0
        %1847 = vmatprep.mubr.f32.mxu0 0.0
        %1848 = vmatmul.mubr.f32.gmra.mrb[0].mxu0 %v1568
        %v1849 = vpop.f32.mrb[0].mxu0
        %v1850 = vadd.f32 %v1493, %v1849
        %v1851 = vpop.f32.mrb[0].mxu0
        %v1852 = vadd.f32 %v1495, %v1851
        %1853 = vdwg.mxu0
        %1854 = vmatprep.subr.mxu0 0.0
        %1855 = vmatpush1.msra.mxu0 %v852
        %1856 = vmatprep.subr.mxu0 0.0
        %1857 = vmatpush1.msra.mxu0 0.0
        %1858 = vmatprep.subr.mxu0 0.0
        %1859 = vmatpush1.msra.mxu0 0.0
        %1860 = vmatprep.subr.mxu0 0.0
        %1861 = vmatpush1.msra.mxu0 0.0
        %1862 = vmatprep.subr.mxu0 0.0
        %1863 = vmatpush1.msra.mxu0 0.0
        %1864 = vmatprep.subr.mxu0 0.0
        %1865 = vmatpush1.msra.mxu0 0.0
        %1866 = vmatprep.subr.mxu0 0.0
        %1867 = vmatpush1.msra.mxu0 0.0
        %1868 = vmatprep.subr.mxu0 0.0
        %1869 = vmatpush1.msra.mxu0 0.0
        %1870 = vmatprep.subr.mxu0 0.0
        %1871 = vmatpush1.msra.mxu0 0.0
        %1872 = vmatprep.subr.mxu0 0.0
        %1873 = vmatpush1.msra.mxu0 0.0
        %1874 = vmatprep.subr.mxu0 0.0
        %1875 = vmatpush1.msra.mxu0 0.0
        %1876 = vmatprep.subr.mxu0 0.0
        %1877 = vmatpush1.msra.mxu0 0.0
        %1878 = vmatprep.subr.mxu0 0.0
        %1879 = vmatpush1.msra.mxu0 0.0
        %1880 = vmatprep.subr.mxu0 0.0
        %1881 = vmatpush1.msra.mxu0 0.0
        %1882 = vmatprep.subr.mxu0 0.0
        %1883 = vmatpush1.msra.mxu0 0.0
        %1884 = vmatprep.subr.mxu0 0.0
        %1885 = vmatpush1.msra.mxu0 0.0
        %1886 = vmatprep.subr.mxu0 0.0
        %1887 = vmatpush1.msra.mxu0 0.0
        %1888 = vmatprep.subr.mxu0 0.0
        %1889 = vmatpush1.msra.mxu0 0.0
        %1890 = vmatprep.subr.mxu0 0.0
        %1891 = vmatpush1.msra.mxu0 0.0
        %1892 = vmatprep.subr.mxu0 0.0
        %1893 = vmatpush1.msra.mxu0 0.0
        %1894 = vmatprep.subr.mxu0 0.0
        %1895 = vmatpush1.msra.mxu0 0.0
        %1896 = vmatprep.subr.mxu0 0.0
        %1897 = vmatpush1.msra.mxu0 0.0
        %1898 = vmatprep.subr.mxu0 0.0
        %1899 = vmatpush1.msra.mxu0 0.0
        %1900 = vmatprep.subr.mxu0 0.0
        %1901 = vmatpush1.msra.mxu0 0.0
        %1902 = vmatprep.subr.mxu0 0.0
        %1903 = vmatpush1.msra.mxu0 0.0
        %1904 = vmatprep.subr.mxu0 0.0
        %1905 = vmatpush1.msra.mxu0 0.0
        %1906 = vmatprep.subr.mxu0 0.0
        %1907 = vmatpush1.msra.mxu0 0.0
        %1908 = vmatprep.subr.mxu0 0.0
        %1909 = vmatpush1.msra.mxu0 0.0
        %1910 = vmatprep.subr.mxu0 0.0
        %1911 = vmatpush1.msra.mxu0 0.0
        %1912 = vmatprep.subr.mxu0 0.0
        %1913 = vmatpush1.msra.mxu0 0.0
        %1914 = vmatprep.subr.mxu0 0.0
        %1915 = vmatpush1.msra.mxu0 0.0
        %1916 = vmatprep.subr.mxu0 0.0
        %1917 = vmatpush1.msra.mxu0 0.0
        %1918 = vmatprep.mubr.f32.mxu0 0.0
        %1919 = vmatmul.mubr.f32.gmra.mrb[0].mxu0 %v1568
        %v1920 = vpop.f32.mrb[0].mxu0
        %v1921 = vadd.f32 %v1564, %v1920
        %v1922 = vpop.f32.mrb[0].mxu0
        %1923 = vdwg.mxu0
        %v1924 = vld [vmem:[%s6] sm:$0xf]
        %1926 = vset.pattern.permute.xlu0 0
        %1927 = vperm.xlu0 %1926, %v1924
        %v1928 = vpop.permute.xlu0 %1927
        %v1930 = vadd.f32 %v921, %v1928
        %v1931 = vadd.f32 %v923, %v1928
        %v1932 = vadd.f32 %v992, %v1928
        %v1933 = vadd.f32 %v994, %v1928
        %v1934 = vadd.f32 %v1063, %v1928
        %v1935 = vadd.f32 %v1065, %v1928
        %v1936 = vadd.f32 %v1134, %v1928
        %v1937 = vadd.f32 %v1136, %v1928
        %v1938 = vadd.f32 %v1205, %v1928
        %v1939 = vmax.f32 %v1930, 0.0
        %v1940 = vmax.f32 %v1931, 0.0
        %v1941 = vmax.f32 %v1932, 0.0
        %v1942 = vmax.f32 %v1933, 0.0
        %v1943 = vmax.f32 %v1934, 0.0
        %v1944 = vmax.f32 %v1935, 0.0
        %v1945 = vmax.f32 %v1936, 0.0
        %v1946 = vmax.f32 %v1937, 0.0
        %v1947 = vmax.f32 %v1938, 0.0
        %v1956 = vcombine.low %v1939, %v1940
        %v1957 = vcombine.low %v1941, %v1942
        %v1958 = vcombine.low %v1943, %v1944
        %v1959 = vcombine.low %v1945, %v1946
        %1964 = vst [vmem:[%s414] sm:$0xff] %v1956
        %1965 = vst [vmem:[%s414 + $0x8] sm:$0xff] %v1957
        %1966 = vst [vmem:[%s414 + $0x10] sm:$0xff] %v1958
        %1967 = vst [vmem:[%s414 + $0x18] sm:$0xff] %v1959
        %1968 = vst [vmem:[%s414 + $0x20] sm:$0xf] %v1947
        %v1969 = vld [vmem:[%s7] sm:$0xf]
        %1971 = vset.pattern.permute.xlu0 0
        %1972 = vperm.xlu0 %1971, %v1969
        %v1973 = vpop.permute.xlu0 %1972
        %v1975 = vadd.f32 %v1637, %v1973
        %v1976 = vadd.f32 %v1639, %v1973
        %v1977 = vadd.f32 %v1708, %v1973
        %v1978 = vadd.f32 %v1710, %v1973
        %v1979 = vadd.f32 %v1779, %v1973
        %v1980 = vadd.f32 %v1781, %v1973
        %v1981 = vadd.f32 %v1850, %v1973
        %v1982 = vadd.f32 %v1852, %v1973
        %v1983 = vadd.f32 %v1921, %v1973
        %v1984 = vmax.f32 %v1975, 0.0
        %v1985 = vmax.f32 %v1976, 0.0
        %v1986 = vmax.f32 %v1977, 0.0
        %v1987 = vmax.f32 %v1978, 0.0
        %v1988 = vmax.f32 %v1979, 0.0
        %v1989 = vmax.f32 %v1980, 0.0
        %v1990 = vmax.f32 %v1981, 0.0
        %v1991 = vmax.f32 %v1982, 0.0
        %v1992 = vmax.f32 %v1983, 0.0
        %v2001 = vcombine.low %v1984, %v1985
        %v2002 = vcombine.low %v1986, %v1987
        %v2003 = vcombine.low %v1988, %v1989
        %v2004 = vcombine.low %v1990, %v1991
        %2009 = vst [vmem:[%s421] sm:$0xff] %v2001
        %2010 = vst [vmem:[%s421 + $0x8] sm:$0xff] %v2002
        %2011 = vst [vmem:[%s421 + $0x10] sm:$0xff] %v2003
        %2012 = vst [vmem:[%s421 + $0x18] sm:$0xff] %v2004
        %2013 = vst [vmem:[%s421 + $0x20] sm:$0xf] %v1992
        %s2014 = sand.u32 %s237, 1
        %s2015 = scalar_lea.sflag [#allocation4], %s2014
        %s2016 = sand.u32 %s237, 1
        %s2017 = smul.addr %s2016, 36
        %s2018 = scalar_lea.vmem [#allocation7], %s2017
        %s2019 = sand.u32 %s265, 1
        %s2020 = scalar_lea.sflag [#allocation9], %s2019
        %s2021 = sand.u32 %s265, 1
        %s2022 = smul.addr %s2021, 36
        %s2023 = scalar_lea.vmem [#allocation8], %s2022
        // Predicated region
        $region61: #{tpu_custom_call.1} parent=51 // pred_check
          %p2024 = pneg %p247
        $region62: #{tpu_custom_call.1} parent=51 // pred_check_branch
          %2026 = sbr.rel (%p2024) target = $region64
        $region63: #{tpu_custom_call.1} parent=51 // pred_region
          %s2027 = smul.u32 9, %s38
          %s2029 = ssub.s32 576, 576
          %2030 = vsyncadd %s2015, %s2029
          %s2031 = smul.addr %s37, 9
          %s2032 = sadd.s32 %s2027, %s2031
          %s2033 = smul.addr %s2032, 64
          %s2034 = scalar_lea.hbm %s8, %s2033
          %s2036 = sshll.u32 %s2018, 4
          %s2037 = int_to_ptr.vmem [resolvable:$true] %s2036
          %2039 = dma.vmem_to_hbm [thread:$0]  %s2037, 576, %s2034, %s2015
        $region64: #{tpu_custom_call.1} parent=51 // pred_fallthru
          _
        // Predicated region
        $region65: #{tpu_custom_call.1} parent=51 // pred_check
          %p2040 = pneg %p275
        $region66: #{tpu_custom_call.1} parent=51 // pred_check_branch
          %2042 = sbr.rel (%p2040) target = $region68
        $region67: #{tpu_custom_call.1} parent=51 // pred_region
          %s2043 = smul.u32 9, %s38
          %s2045 = ssub.s32 576, 576
          %2046 = vsyncadd %s2020, %s2045
          %s2047 = smul.addr %s37, 9
          %s2048 = sadd.s32 %s2043, %s2047
          %s2049 = smul.addr %s2048, 64
          %s2050 = scalar_lea.hbm %s9, %s2049
          %s2052 = sshll.u32 %s2023, 4
          %s2053 = int_to_ptr.vmem [resolvable:$true] %s2052
          %2055 = dma.vmem_to_hbm [thread:$0]  %s2053, 576, %s2050, %s2020
        $region68: #{tpu_custom_call.1} parent=51 // pred_fallthru
          _
      $region52: #{tpu_custom_call.1} parent=5 // pred_fallthru
        _
      %p2056 = scmp.le.s32.totalorder 2, %s28
      // Predicated region
      $region69: #{tpu_custom_call.1} parent=5 // pred_check
        %p2057 = pneg %p2056
      $region70: #{tpu_custom_call.1} parent=5 // pred_check_branch
        %2059 = sbr.rel (%p2057) target = $region72
      $region71: #{tpu_custom_call.1} parent=5 // pred_region
        %s2060 = ssub.s32 %s28, 2
        // Predicated region
        $region73: #{tpu_custom_call.1} parent=71 // pred_check
          %p2061 = pneg %p253
        $region74: #{tpu_custom_call.1} parent=71 // pred_check_branch
          %2063 = sbr.rel (%p2061) target = $region76
        $region75: #{tpu_custom_call.1} parent=71 // pred_region
          %s2064 = sand.u32 %s238, 1
          %s2065 = scalar_lea.sflag [#allocation4], %s2064
          %s2066 = sand.u32 %s238, 1
          %s2067 = smul.addr %s2066, 36
          %s2068 = scalar_lea.vmem [#allocation7], %s2067
          %2069 = dma.done %s2065, 576
        $region76: #{tpu_custom_call.1} parent=71 // pred_fallthru
          _
        // Predicated region
        $region77: #{tpu_custom_call.1} parent=71 // pred_check
          %p2070 = pneg %p281
        $region78: #{tpu_custom_call.1} parent=71 // pred_check_branch
          %2072 = sbr.rel (%p2070) target = $region80
        $region79: #{tpu_custom_call.1} parent=71 // pred_region
          %s2073 = sand.u32 %s266, 1
          %s2074 = scalar_lea.sflag [#allocation9], %s2073
          %s2075 = sand.u32 %s266, 1
          %s2076 = smul.addr %s2075, 36
          %s2077 = scalar_lea.vmem [#allocation8], %s2076
          %2078 = dma.done %s2074, 576
        $region80: #{tpu_custom_call.1} parent=71 // pred_fallthru
          _
      $region72: #{tpu_custom_call.1} parent=5 // pred_fallthru
        _
    $region6: #{tpu_custom_call.1} parent=1 // loop_footer
      %s32 = sadd.s32 1, %s28
    $region7: #{tpu_custom_call.1} parent=1 // loop_footer_branch
      %27 = sbr.rel target = $region3
    $region8: #{tpu_custom_call.1} parent=1 // loop_exit
      _
    %2079 = vsyncpa [#allocation3], 1
    %s2080 = scalar_lea.sflag [#allocation3], 1
    %2081 = vsyncpa %s2080, 1
    %2082 = vsyncpa [#allocation6], 1
    %s2083 = scalar_lea.sflag [#allocation6], 1
    %2084 = vsyncpa %s2083, 1
    %2085 = vsyncpa [#allocation4], 1
    %s2086 = scalar_lea.sflag [#allocation4], 1
    %2087 = vsyncpa %s2086, 1
    %2088 = vsyncpa [#allocation9], 1
    %s2089 = scalar_lea.sflag [#allocation9], 1
    %2090 = vsyncpa %s2089, 1

</llo_original>
